<compile_context>
chip_gen: v7x
topology: tpu7x:2x2x1
jax: 0.10.0
libtpu: 0.0.40
codegen_flags: <defaults>
</compile_context>

<pallas_src>
import functools
import math

import jax
import jax.numpy as jnp
from jax.experimental import pallas as pl
from jax.experimental.pallas import tpu as pltpu


def _round_up(x, m):
    return ((x + m - 1) // m) * m


def _mha_kernel(q_ref, k_ref, v_ref,
                wq_ref, bq_ref, wk_ref, bk_ref, wv_ref, bv_ref,
                wf_ref, bf_ref,
                o_ref,
                kproj_ref, vproj_ref, out_acc_ref,
                *, scale, d_head, hg, tq, tkv, n_kv_chunks, skv_valid):
    """One grid step = (batch b, head-group g, query tile s).

    Shapes seen by the kernel (leading batch/group dims squeezed):
      q_ref:   (tq, d_model)        k_ref/v_ref: (Skv_pad, d_model)
      w*_ref:  (d_model, hg*d)      b*_ref:      (1, hg*d) f32
      wf_ref:  (hg*d, d_model)      bf_ref:      (1, d_model) f32
      o_ref:   (tq, d_model)
      kproj/vproj: (Skv_pad, hg*d) bf16 scratch (per-group K/V projections)
      out_acc: (Sq_pad, d_model)   f32 scratch (output-proj accumulator)
    """
    g = pl.program_id(1)                 # head-group (output-proj reduction)
    s = pl.program_id(2)                 # query tile
    n_groups = pl.num_programs(1)
    cdt = kproj_ref.dtype                # compute dtype fed to the MXU (bf16)

    # ---- K/V projections for this head group: once per (batch, group). ----
    @pl.when(s == 0)
    def _():
        kh = jnp.dot(k_ref[...], wk_ref[...],
                     preferred_element_type=jnp.float32) + bk_ref[...]
        vh = jnp.dot(v_ref[...], wv_ref[...],
                     preferred_element_type=jnp.float32) + bv_ref[...]
        kproj_ref[...] = kh.astype(cdt)
        vproj_ref[...] = vh.astype(cdt)

    # ---- Q projection for this tile (1/sqrt(d) folded in here: tq*d work). ----
    qh = (jnp.dot(q_ref[...], wq_ref[...], preferred_element_type=jnp.float32)
          + bq_ref[...]) * scale
    qh = qh.astype(cdt)                                   # (tq, hg*d_head)

    # ---- per-head attention with online softmax over KV chunks. ----
    masked = skv_valid < n_kv_chunks * tkv
    oh_parts = []
    for i in range(hg):
        q_i = qh[:, i * d_head:(i + 1) * d_head]

        def kv_step(c, carry, _i=i, _q=q_i):
            m_p, l_p, acc_p = carry
            start = pl.multiple_of(c * tkv, tkv)
            k_c = kproj_ref[pl.ds(start, tkv), pl.ds(_i * d_head, d_head)]
            v_c = vproj_ref[pl.ds(start, tkv), pl.ds(_i * d_head, d_head)]
            # Contract the feature dim directly (no XLU transpose of k_c).
            sc = jax.lax.dot_general(_q, k_c, (((1,), (1,)), ((), ())),
                                     preferred_element_type=jnp.float32)
            if masked:
                col = start + jax.lax.broadcasted_iota(jnp.int32, sc.shape, 1)
                sc = jnp.where(col < skv_valid, sc, -1e30)
            m_n = jnp.maximum(m_p, sc.max(axis=-1, keepdims=True))
            alpha = jnp.exp(m_p - m_n)
            p = jnp.exp(sc - m_n)
            l_n = alpha * l_p + p.sum(axis=-1, keepdims=True)
            acc_n = alpha * acc_p + jnp.dot(p.astype(cdt), v_c,
                                            preferred_element_type=jnp.float32)
            return m_n, l_n, acc_n

        init = (jnp.full((tq, 1), -jnp.inf, jnp.float32),
                jnp.zeros((tq, 1), jnp.float32),
                jnp.zeros((tq, d_head), jnp.float32))
        _, l_f, acc_f = jax.lax.fori_loop(0, n_kv_chunks, kv_step, init,
                                          unroll=n_kv_chunks <= 4)
        oh_parts.append(acc_f * pl.reciprocal(l_f, approx=True))

    oh = jnp.concatenate(oh_parts, axis=-1).astype(cdt)   # (tq, hg*d_head)

    # ---- output projection, accumulated over head groups. ----
    contrib = jnp.dot(oh, wf_ref[...], preferred_element_type=jnp.float32)
    row = pl.multiple_of(s * tq, tq)

    @pl.when(g == 0)
    def _():
        out_acc_ref[pl.ds(row, tq), :] = contrib

    @pl.when(g != 0)
    def _():
        out_acc_ref[pl.ds(row, tq), :] = out_acc_ref[pl.ds(row, tq), :] + contrib

    @pl.when(g == n_groups - 1)
    def _():
        o_ref[...] = (out_acc_ref[pl.ds(row, tq), :] + bf_ref[...]).astype(o_ref.dtype)


def prepare_mha_params(params, *, d_model, h, compute_dtype=jnp.bfloat16):
    """One-time weight re-layout (call once at parameter load).

    params = (Wq, bq, Wk, bk, Wv, bv, Wf, bf) in JAX layout:
      Wq/Wk/Wv: (d_model, d_model*h), biases (d_model*h,)
      Wf: (d_model*h, d_model), bf: (d_model,)
    """
    Wq, bq, Wk, bk, Wv, bv, Wf, bf = params

    # Heads per grid step: fill ~256 MXU lanes on v6e/v7x when d_model < 256.
    hg = 1
    for cand in range(min(h, max(1, 256 // d_model)), 0, -1):
        if h % cand == 0:
            hg = cand
            break
    n_groups = h // hg

    # PyTorch head split: proj.view(B,S,d_model,h) => head j reads output
    # columns m*h + j of the (d_model*h)-wide projection.
    def split_w(W):   # (d_model, d_model*h) -> (n_groups, d_model, hg*d_model)
        Wh = jnp.transpose(W.reshape(d_model, d_model, h), (2, 0, 1))   # (h,d,d)
        Wg = jnp.transpose(Wh.reshape(n_groups, hg, d_model, d_model),
                           (0, 2, 1, 3)).reshape(n_groups, d_model, hg * d_model)
        return Wg.astype(compute_dtype)

    def split_b(b):   # (d_model*h,) -> (n_groups, 1, hg*d_model), kept f32
        bh = jnp.transpose(b.reshape(d_model, h), (1, 0))               # (h, d)
        return bh.reshape(n_groups, 1, hg * d_model).astype(jnp.float32)

    # Final linear rows m*h + j -> per-head (d_model, d_model) slices, grouped.
    Wf_h = jnp.transpose(Wf.reshape(d_model, h, d_model), (1, 0, 2))    # (h,d,d)
    Wf_g = Wf_h.reshape(n_groups, hg * d_model, d_model).astype(compute_dtype)
    bf2 = bf.reshape(1, d_model).astype(jnp.float32)

    return dict(d_model=d_model, h=h, hg=hg, n_groups=n_groups,
                compute_dtype=compute_dtype,
                Wq=split_w(Wq), bq=split_b(bq),
                Wk=split_w(Wk), bk=split_b(bk),
                Wv=split_w(Wv), bv=split_b(bv),
                Wf=Wf_g, bf=bf2)


def multi_head_attention(queries, keys, values, prep, *, mask=None):
    """queries: (B, Sq, d_model); keys/values: (B, Skv, d_model)."""
    # TODO(synk): optional additive attention mask not implemented (module
    # default is mask=None); it must enter the online-softmax update as an
    # additive score term before the running max, not after normalization.
    assert mask is None
    d_model = prep["d_model"]
    hg, n_groups = prep["hg"], prep["n_groups"]
    cdt = prep["compute_dtype"]
    dg = hg * d_model

    B, Sq, _ = queries.shape
    Skv = keys.shape[1]

    # Tile sizes; wrapper-side padding so arbitrary Sq / Skv are handled.
    tq = min(_round_up(Sq, 8), 256)
    Sq_pad = _round_up(Sq, tq)
    tkv = min(_round_up(Skv, 8), 512)
    Skv_pad = _round_up(Skv, tkv)
    n_q, n_kv = Sq_pad // tq, Skv_pad // tkv

    q = queries.astype(cdt)
    k = keys.astype(cdt)
    v = values.astype(cdt)
    if Sq_pad != Sq:
        q = jnp.pad(q, ((0, 0), (0, Sq_pad - Sq), (0, 0)))
    if Skv_pad != Skv:
        k = jnp.pad(k, ((0, 0), (0, Skv_pad - Skv), (0, 0)))
        v = jnp.pad(v, ((0, 0), (0, Skv_pad - Skv), (0, 0)))

    kernel = functools.partial(
        _mha_kernel, scale=1.0 / math.sqrt(d_model), d_head=d_model, hg=hg,
        tq=tq, tkv=tkv, n_kv_chunks=n_kv, skv_valid=Skv)

    w_spec = pl.BlockSpec((None, d_model, dg), lambda b, g, s: (g, 0, 0))
    b_spec = pl.BlockSpec((None, 1, dg), lambda b, g, s: (g, 0, 0))
    wf_spec = pl.BlockSpec((None, dg, d_model), lambda b, g, s: (g, 0, 0))
    kv_spec = pl.BlockSpec((None, Skv_pad, d_model), lambda b, g, s: (b, 0, 0))

    out = pl.pallas_call(
        kernel,
        out_shape=jax.ShapeDtypeStruct((B, Sq_pad, d_model), queries.dtype),
        grid_spec=pltpu.PrefetchScalarGridSpec(
            num_scalar_prefetch=0,
            grid=(B, n_groups, n_q),
            in_specs=[
                pl.BlockSpec((None, tq, d_model), lambda b, g, s: (b, s, 0)),   # q
                kv_spec,                                                        # k
                kv_spec,                                                        # v
                w_spec, b_spec,                                                 # Wq, bq
                w_spec, b_spec,                                                 # Wk, bk
                w_spec, b_spec,                                                 # Wv, bv
                wf_spec,                                                        # Wf
                pl.BlockSpec((1, d_model), lambda b, g, s: (0, 0)),             # bf
            ],
            out_specs=pl.BlockSpec((None, tq, d_model), lambda b, g, s: (b, s, 0)),
            scratch_shapes=[
                pltpu.VMEM((Skv_pad, dg), cdt),                # K projection cache
                pltpu.VMEM((Skv_pad, dg), cdt),                # V projection cache
                pltpu.VMEM((Sq_pad, d_model), jnp.float32),    # out-proj accumulator
            ],
        ),
        compiler_params=pltpu.CompilerParams(
            dimension_semantics=("parallel", "arbitrary", "arbitrary"),
            vmem_limit_bytes=48 * 1024 * 1024,
        ),
    )(q, k, v,
      prep["Wq"], prep["bq"], prep["Wk"], prep["bk"],
      prep["Wv"], prep["bv"], prep["Wf"], prep["bf"])

    return out[:, :Sq, :] if Sq_pad != Sq else out


def mha_reference(q, k, v, Wq, bq, Wk, bk, Wv, bv, Wf, bf, d_model, h):
    """Pure-JAX port of the PyTorch forward (same permute/view math)."""
    B, Sq, _ = q.shape
    Skv = k.shape[1]
    hi = jax.lax.Precision.HIGHEST
    Q = jnp.dot(q, Wq, precision=hi) + bq
    K = jnp.dot(k, Wk, precision=hi) + bk
    V = jnp.dot(v, Wv, precision=hi) + bv
    Qh = jnp.transpose(Q.reshape(B, Sq, d_model, h), (3, 0, 1, 2))   # (h,B,Sq,d)
    Kh = jnp.transpose(K.reshape(B, Skv, d_model, h), (3, 0, 2, 1))  # (h,B,d,Skv)
    Vh = jnp.transpose(V.reshape(B, Skv, d_model, h), (3, 0, 1, 2))  # (h,B,Skv,d)
    s = jnp.matmul(Qh, Kh, precision=hi) / math.sqrt(d_model)
    p = jax.nn.softmax(s, axis=-1)
    o = jnp.matmul(p, Vh, precision=hi)                               # (h,B,Sq,d)
    concat = jnp.transpose(o, (1, 2, 3, 0)).reshape(B, Sq, d_model * h)
    return jnp.dot(concat, Wf, precision=hi) + bf


if __name__ == "__main__":
    B, SQ, SKV, D_MODEL, H = 2, 8, 8, 128, 4

    key = jax.random.PRNGKey(0)
    ks = jax.random.split(key, 10)
    q = jax.random.normal(ks[0], (B, SQ, D_MODEL), jnp.float32)
    k = jax.random.normal(ks[1], (B, SKV, D_MODEL), jnp.float32)
    v = jax.random.normal(ks[2], (B, SKV, D_MODEL), jnp.float32)

    def init_linear(kk, fan_in, fan_out):
        kw, kb = jax.random.split(kk)
        bound = 1.0 / math.sqrt(fan_in)
        W = jax.random.uniform(kw, (fan_in, fan_out), jnp.float32, -bound, bound)
        b = jax.random.uniform(kb, (fan_out,), jnp.float32, -bound, bound)
        return W, b

    Wq, bq = init_linear(ks[3], D_MODEL, D_MODEL * H)
    Wk, bk = init_linear(ks[4], D_MODEL, D_MODEL * H)
    Wv, bv = init_linear(ks[5], D_MODEL, D_MODEL * H)
    Wf, bf = init_linear(ks[6], D_MODEL * H, D_MODEL)

    # One-time weight re-layout (head split + head grouping + bf16 cast).
    prep = prepare_mha_params((Wq, bq, Wk, bk, Wv, bv, Wf, bf),
                              d_model=D_MODEL, h=H)

    # Main check.
    out = multi_head_attention(q, k, v, prep)
    out = jax.block_until_ready(out)
    ref = mha_reference(q, k, v, Wq, bq, Wk, bk, Wv, bv, Wf, bf, D_MODEL, H)
    assert out.shape == (B, SQ, D_MODEL)
    assert jnp.allclose(out, ref, atol=2e-2, rtol=2e-2), "mismatch vs reference"

    # Ragged-shape check: exercises Sq/Skv padding + in-kernel key masking.
    q2 = jax.random.normal(ks[7], (B, 5, D_MODEL), jnp.float32)
    k2 = jax.random.normal(ks[8], (B, 10, D_MODEL), jnp.float32)
    v2 = jax.random.normal(ks[9], (B, 10, D_MODEL), jnp.float32)
    out2 = jax.block_until_ready(multi_head_attention(q2, k2, v2, prep))
    ref2 = mha_reference(q2, k2, v2, Wq, bq, Wk, bk, Wv, bv, Wf, bf, D_MODEL, H)
    assert out2.shape == (B, 5, D_MODEL)
    assert jnp.allclose(out2, ref2, atol=2e-2, rtol=2e-2), "ragged mismatch"

    print("KERNEL_OK")
</pallas_src>

<mosaic_0001>
module attributes {stable_mosaic.version = 11 : i64} {
  func.func @_mha_kernel(%arg0: i32, %arg1: i32, %arg2: i32, %arg3: memref<1x8x128xbf16, #tpu.memory_space<vmem>>, %arg4: memref<1x8x128xbf16, #tpu.memory_space<vmem>>, %arg5: memref<1x8x128xbf16, #tpu.memory_space<vmem>>, %arg6: memref<1x128x256xbf16, #tpu.memory_space<vmem>>, %arg7: memref<1x1x256xf32, #tpu.memory_space<vmem>>, %arg8: memref<1x128x256xbf16, #tpu.memory_space<vmem>>, %arg9: memref<1x1x256xf32, #tpu.memory_space<vmem>>, %arg10: memref<1x128x256xbf16, #tpu.memory_space<vmem>>, %arg11: memref<1x1x256xf32, #tpu.memory_space<vmem>>, %arg12: memref<1x256x128xbf16, #tpu.memory_space<vmem>>, %arg13: memref<1x128xf32, #tpu.memory_space<vmem>>, %arg14: memref<1x8x128xf32, #tpu.memory_space<vmem>>, %arg15: memref<8x256xbf16, #tpu.memory_space<vmem>>, %arg16: memref<8x256xbf16, #tpu.memory_space<vmem>>, %arg17: memref<8x128xf32, #tpu.memory_space<vmem>>) attributes {dimension_semantics = [#tpu.dimension_semantics<parallel>, #tpu.dimension_semantics<arbitrary>, #tpu.dimension_semantics<arbitrary>], iteration_bounds = array<i64: 2, 2, 1>, scalar_prefetch = 0 : i64, scratch_operands = 3 : i64, tpu.core_type = #tpu.core_type<tc>, window_params = [{transform_indices = @transform_0, window_bounds = array<i64: 1, 8, 128>}, {transform_indices = @transform_1, window_bounds = array<i64: 1, 8, 128>}, {transform_indices = @transform_2, window_bounds = array<i64: 1, 8, 128>}, {transform_indices = @transform_3, window_bounds = array<i64: 1, 128, 256>}, {transform_indices = @transform_4, window_bounds = array<i64: 1, 1, 256>}, {transform_indices = @transform_5, window_bounds = array<i64: 1, 128, 256>}, {transform_indices = @transform_6, window_bounds = array<i64: 1, 1, 256>}, {transform_indices = @transform_7, window_bounds = array<i64: 1, 128, 256>}, {transform_indices = @transform_8, window_bounds = array<i64: 1, 1, 256>}, {transform_indices = @transform_9, window_bounds = array<i64: 1, 256, 128>}, {pipeline_mode = #tpu.pipeline_mode<synchronous>, transform_indices = @transform_10, window_bounds = array<i64: 1, 128>}, {transform_indices = @transform_11, window_bounds = array<i64: 1, 8, 128>}]} {
    %c0_i32 = arith.constant 0 : i32
    %0 = arith.cmpi eq, %arg2, %c0_i32 : i32
    %1 = arith.extui %0 : i1 to i32
    %c0_i32_0 = arith.constant 0 : i32
    %2 = arith.cmpi ne, %1, %c0_i32_0 : i32
    scf.if %2 {
      %c0_42 = arith.constant 0 : index
      %c0_43 = arith.constant 0 : index
      %c0_44 = arith.constant 0 : index
      %93 = vector.load %arg4[%c0_42, %c0_43, %c0_44] : memref<1x8x128xbf16, #tpu.memory_space<vmem>>, vector<1x8x128xbf16>
      %94 = vector.shape_cast %93 : vector<1x8x128xbf16> to vector<8x128xbf16>
      %c0_45 = arith.constant 0 : index
      %c0_46 = arith.constant 0 : index
      %c0_47 = arith.constant 0 : index
      %95 = vector.load %arg8[%c0_45, %c0_46, %c0_47] : memref<1x128x256xbf16, #tpu.memory_space<vmem>>, vector<1x128x256xbf16>
      %96 = vector.shape_cast %95 : vector<1x128x256xbf16> to vector<128x256xbf16>
      %cst_48 = arith.constant dense<0.000000e+00> : vector<8x256xf32>
      %97 = tpu.matmul %94, %96, %cst_48 {dimension_numbers = #tpu.dot_dimension_numbers<[1], [0], [0], [1], [0, 0, 1, 1], [], []>} : vector<8x128xbf16>, vector<128x256xbf16>, vector<8x256xf32> -> vector<8x256xf32>
      %c0_49 = arith.constant 0 : index
      %c0_50 = arith.constant 0 : index
      %c0_51 = arith.constant 0 : index
      %98 = vector.load %arg9[%c0_49, %c0_50, %c0_51] : memref<1x1x256xf32, #tpu.memory_space<vmem>>, vector<1x1x256xf32>
      %99 = vector.shape_cast %98 : vector<1x1x256xf32> to vector<1x256xf32>
      %100 = vector.broadcast %99 : vector<1x256xf32> to vector<8x256xf32>
      %101 = arith.addf %97, %100 : vector<8x256xf32>
      %c0_52 = arith.constant 0 : index
      %c0_53 = arith.constant 0 : index
      %c0_54 = arith.constant 0 : index
      %102 = vector.load %arg5[%c0_52, %c0_53, %c0_54] : memref<1x8x128xbf16, #tpu.memory_space<vmem>>, vector<1x8x128xbf16>
      %103 = vector.shape_cast %102 : vector<1x8x128xbf16> to vector<8x128xbf16>
      %c0_55 = arith.constant 0 : index
      %c0_56 = arith.constant 0 : index
      %c0_57 = arith.constant 0 : index
      %104 = vector.load %arg10[%c0_55, %c0_56, %c0_57] : memref<1x128x256xbf16, #tpu.memory_space<vmem>>, vector<1x128x256xbf16>
      %105 = vector.shape_cast %104 : vector<1x128x256xbf16> to vector<128x256xbf16>
      %cst_58 = arith.constant dense<0.000000e+00> : vector<8x256xf32>
      %106 = tpu.matmul %103, %105, %cst_58 {dimension_numbers = #tpu.dot_dimension_numbers<[1], [0], [0], [1], [0, 0, 1, 1], [], []>} : vector<8x128xbf16>, vector<128x256xbf16>, vector<8x256xf32> -> vector<8x256xf32>
      %c0_59 = arith.constant 0 : index
      %c0_60 = arith.constant 0 : index
      %c0_61 = arith.constant 0 : index
      %107 = vector.load %arg11[%c0_59, %c0_60, %c0_61] : memref<1x1x256xf32, #tpu.memory_space<vmem>>, vector<1x1x256xf32>
      %108 = vector.shape_cast %107 : vector<1x1x256xf32> to vector<1x256xf32>
      %109 = vector.broadcast %108 : vector<1x256xf32> to vector<8x256xf32>
      %110 = arith.addf %106, %109 : vector<8x256xf32>
      %111 = arith.truncf %101 : vector<8x256xf32> to vector<8x256xbf16>
      %c0_62 = arith.constant 0 : index
      %c0_63 = arith.constant 0 : index
      %112 = vector.load %arg15[%c0_62, %c0_63] : memref<8x256xbf16, #tpu.memory_space<vmem>>, vector<8x256xbf16>
      tpu.vector_store %arg15[%c0_62, %c0_63], %111 {strides = array<i32>} : memref<8x256xbf16, #tpu.memory_space<vmem>>, vector<8x256xbf16>,
      %113 = arith.truncf %110 : vector<8x256xf32> to vector<8x256xbf16>
      %c0_64 = arith.constant 0 : index
      %c0_65 = arith.constant 0 : index
      %114 = vector.load %arg16[%c0_64, %c0_65] : memref<8x256xbf16, #tpu.memory_space<vmem>>, vector<8x256xbf16>
      tpu.vector_store %arg16[%c0_64, %c0_65], %113 {strides = array<i32>} : memref<8x256xbf16, #tpu.memory_space<vmem>>, vector<8x256xbf16>,
    } else {
    }
    %c0 = arith.constant 0 : index
    %c0_1 = arith.constant 0 : index
    %c0_2 = arith.constant 0 : index
    %3 = vector.load %arg3[%c0, %c0_1, %c0_2] : memref<1x8x128xbf16, #tpu.memory_space<vmem>>, vector<1x8x128xbf16>
    %4 = vector.shape_cast %3 : vector<1x8x128xbf16> to vector<8x128xbf16>
    %c0_3 = arith.constant 0 : index
    %c0_4 = arith.constant 0 : index
    %c0_5 = arith.constant 0 : index
    %5 = vector.load %arg6[%c0_3, %c0_4, %c0_5] : memref<1x128x256xbf16, #tpu.memory_space<vmem>>, vector<1x128x256xbf16>
    %6 = vector.shape_cast %5 : vector<1x128x256xbf16> to vector<128x256xbf16>
    %cst = arith.constant dense<0.000000e+00> : vector<8x256xf32>
    %7 = tpu.matmul %4, %6, %cst {dimension_numbers = #tpu.dot_dimension_numbers<[1], [0], [0], [1], [0, 0, 1, 1], [], []>} : vector<8x128xbf16>, vector<128x256xbf16>, vector<8x256xf32> -> vector<8x256xf32>
    %c0_6 = arith.constant 0 : index
    %c0_7 = arith.constant 0 : index
    %c0_8 = arith.constant 0 : index
    %8 = vector.load %arg7[%c0_6, %c0_7, %c0_8] : memref<1x1x256xf32, #tpu.memory_space<vmem>>, vector<1x1x256xf32>
    %9 = vector.shape_cast %8 : vector<1x1x256xf32> to vector<1x256xf32>
    %10 = vector.broadcast %9 : vector<1x256xf32> to vector<8x256xf32>
    %11 = arith.addf %7, %10 : vector<8x256xf32>
    %cst_9 = arith.constant 0.0883883461 : f32
    %12 = vector.broadcast %cst_9 : f32 to vector<8x256xf32>
    %13 = arith.mulf %11, %12 : vector<8x256xf32>
    %14 = arith.truncf %13 : vector<8x256xf32> to vector<8x256xbf16>
    %15 = vector.extract_strided_slice %14 {offsets = [0, 0], sizes = [8, 128], strides = [1, 1]} : vector<8x256xbf16> to vector<8x128xbf16>
    %cst_10 = arith.constant 0xFF800000 : f32
    %16 = vector.broadcast %cst_10 : f32 to vector<8x1xf32>
    %cst_11 = arith.constant 0.000000e+00 : f32
    %17 = vector.broadcast %cst_11 : f32 to vector<8x1xf32>
    %cst_12 = arith.constant 0.000000e+00 : f32
    %18 = vector.broadcast %cst_12 : f32 to vector<8x128xf32>
    %c0_i32_13 = arith.constant 0 : i32
    %c8_i32 = arith.constant 8 : i32
    %19 = arith.muli %c0_i32_13, %c8_i32 : i32
    %20 = tpu.assume_multiple %19, 8 : i32
    %21 = arith.index_cast %20 : i32 to index
    %c0_14 = arith.constant 0 : index
    %22 = vector.load %arg15[%21, %c0_14] : memref<8x256xbf16, #tpu.memory_space<vmem>>, vector<8x128xbf16>
    %23 = arith.index_cast %20 : i32 to index
    %c0_15 = arith.constant 0 : index
    %24 = vector.load %arg16[%23, %c0_15] : memref<8x256xbf16, #tpu.memory_space<vmem>>, vector<8x128xbf16>
    %cst_16 = arith.constant dense<0.000000e+00> : vector<8x8xf32>
    %25 = tpu.matmul %15, %22, %cst_16 {dimension_numbers = #tpu.dot_dimension_numbers<[1], [1], [0], [0], [0, 0, 1, 0], [], []>} : vector<8x128xbf16>, vector<8x128xbf16>, vector<8x8xf32> -> vector<8x8xf32>
    %cst_17 = arith.constant dense<0xFF800000> : vector<8xf32>
    %26 = vector.multi_reduction <maximumf>, %25, %cst_17 [1] : vector<8x8xf32> to vector<8xf32>
    %27 = vector.shape_cast %26 : vector<8xf32> to vector<8x1xf32>
    %28 = arith.maximumf %16, %27 : vector<8x1xf32>
    %29 = arith.subf %16, %28 : vector<8x1xf32>
    %30 = math.exp %29 : vector<8x1xf32>
    %31 = vector.broadcast %28 : vector<8x1xf32> to vector<8x8xf32>
    %32 = arith.subf %25, %31 : vector<8x8xf32>
    %33 = math.exp %32 : vector<8x8xf32>
    %34 = arith.mulf %30, %17 : vector<8x1xf32>
    %cst_18 = arith.constant dense<0.000000e+00> : vector<8xf32>
    %35 = vector.multi_reduction <add>, %33, %cst_18 [1] : vector<8x8xf32> to vector<8xf32>
    %36 = vector.shape_cast %35 : vector<8xf32> to vector<8x1xf32>
    %37 = arith.addf %34, %36 : vector<8x1xf32>
    %38 = vector.broadcast %30 : vector<8x1xf32> to vector<8x128xf32>
    %39 = arith.mulf %38, %18 : vector<8x128xf32>
    %40 = arith.truncf %33 : vector<8x8xf32> to vector<8x8xbf16>
    %cst_19 = arith.constant dense<0.000000e+00> : vector<8x128xf32>
    %41 = tpu.matmul %40, %24, %cst_19 {dimension_numbers = #tpu.dot_dimension_numbers<[1], [0], [0], [1], [0, 0, 1, 1], [], []>} : vector<8x8xbf16>, vector<8x128xbf16>, vector<8x128xf32> -> vector<8x128xf32>
    %42 = arith.addf %39, %41 : vector<8x128xf32>
    %c1_i32 = arith.constant 1 : i32
    %43 = tpu.reciprocal %37 {approx = true} : vector<8x1xf32> -> vector<8x1xf32>
    %44 = vector.broadcast %43 : vector<8x1xf32> to vector<8x128xf32>
    %45 = arith.mulf %42, %44 : vector<8x128xf32>
    %46 = vector.extract_strided_slice %14 {offsets = [0, 128], sizes = [8, 128], strides = [1, 1]} : vector<8x256xbf16> to vector<8x128xbf16>
    %cst_20 = arith.constant 0xFF800000 : f32
    %47 = vector.broadcast %cst_20 : f32 to vector<8x1xf32>
    %cst_21 = arith.constant 0.000000e+00 : f32
    %48 = vector.broadcast %cst_21 : f32 to vector<8x1xf32>
    %cst_22 = arith.constant 0.000000e+00 : f32
    %49 = vector.broadcast %cst_22 : f32 to vector<8x128xf32>
    %c0_i32_23 = arith.constant 0 : i32
    %c8_i32_24 = arith.constant 8 : i32
    %50 = arith.muli %c0_i32_23, %c8_i32_24 : i32
    %51 = tpu.assume_multiple %50, 8 : i32
    %52 = arith.index_cast %51 : i32 to index
    %c128 = arith.constant 128 : index
    %53 = vector.load %arg15[%52, %c128] : memref<8x256xbf16, #tpu.memory_space<vmem>>, vector<8x128xbf16>
    %54 = arith.index_cast %51 : i32 to index
    %c128_25 = arith.constant 128 : index
    %55 = vector.load %arg16[%54, %c128_25] : memref<8x256xbf16, #tpu.memory_space<vmem>>, vector<8x128xbf16>
    %cst_26 = arith.constant dense<0.000000e+00> : vector<8x8xf32>
    %56 = tpu.matmul %46, %53, %cst_26 {dimension_numbers = #tpu.dot_dimension_numbers<[1], [1], [0], [0], [0, 0, 1, 0], [], []>} : vector<8x128xbf16>, vector<8x128xbf16>, vector<8x8xf32> -> vector<8x8xf32>
    %cst_27 = arith.constant dense<0xFF800000> : vector<8xf32>
    %57 = vector.multi_reduction <maximumf>, %56, %cst_27 [1] : vector<8x8xf32> to vector<8xf32>
    %58 = vector.shape_cast %57 : vector<8xf32> to vector<8x1xf32>
    %59 = arith.maximumf %47, %58 : vector<8x1xf32>
    %60 = arith.subf %47, %59 : vector<8x1xf32>
    %61 = math.exp %60 : vector<8x1xf32>
    %62 = vector.broadcast %59 : vector<8x1xf32> to vector<8x8xf32>
    %63 = arith.subf %56, %62 : vector<8x8xf32>
    %64 = math.exp %63 : vector<8x8xf32>
    %65 = arith.mulf %61, %48 : vector<8x1xf32>
    %cst_28 = arith.constant dense<0.000000e+00> : vector<8xf32>
    %66 = vector.multi_reduction <add>, %64, %cst_28 [1] : vector<8x8xf32> to vector<8xf32>
    %67 = vector.shape_cast %66 : vector<8xf32> to vector<8x1xf32>
    %68 = arith.addf %65, %67 : vector<8x1xf32>
    %69 = vector.broadcast %61 : vector<8x1xf32> to vector<8x128xf32>
    %70 = arith.mulf %69, %49 : vector<8x128xf32>
    %71 = arith.truncf %64 : vector<8x8xf32> to vector<8x8xbf16>
    %cst_29 = arith.constant dense<0.000000e+00> : vector<8x128xf32>
    %72 = tpu.matmul %71, %55, %cst_29 {dimension_numbers = #tpu.dot_dimension_numbers<[1], [0], [0], [1], [0, 0, 1, 1], [], []>} : vector<8x8xbf16>, vector<8x128xbf16>, vector<8x128xf32> -> vector<8x128xf32>
    %73 = arith.addf %70, %72 : vector<8x128xf32>
    %c1_i32_30 = arith.constant 1 : i32
    %74 = tpu.reciprocal %68 {approx = true} : vector<8x1xf32> -> vector<8x1xf32>
    %75 = vector.broadcast %74 : vector<8x1xf32> to vector<8x128xf32>
    %76 = arith.mulf %73, %75 : vector<8x128xf32>
    %77 = tpu.concatenate %45, %76 in 1 : vector<8x128xf32>, vector<8x128xf32> -> vector<8x256xf32>
    %78 = arith.truncf %77 : vector<8x256xf32> to vector<8x256xbf16>
    %c0_31 = arith.constant 0 : index
    %c0_32 = arith.constant 0 : index
    %c0_33 = arith.constant 0 : index
    %79 = vector.load %arg12[%c0_31, %c0_32, %c0_33] : memref<1x256x128xbf16, #tpu.memory_space<vmem>>, vector<1x256x128xbf16>
    %80 = vector.shape_cast %79 : vector<1x256x128xbf16> to vector<256x128xbf16>
    %cst_34 = arith.constant dense<0.000000e+00> : vector<8x128xf32>
    %81 = tpu.matmul %78, %80, %cst_34 {dimension_numbers = #tpu.dot_dimension_numbers<[1], [0], [0], [1], [0, 0, 1, 1], [], []>} : vector<8x256xbf16>, vector<256x128xbf16>, vector<8x128xf32> -> vector<8x128xf32>
    %c8_i32_35 = arith.constant 8 : i32
    %82 = arith.muli %arg2, %c8_i32_35 : i32
    %83 = tpu.assume_multiple %82, 8 : i32
    %c0_i32_36 = arith.constant 0 : i32
    %84 = arith.cmpi eq, %arg1, %c0_i32_36 : i32
    %85 = arith.extui %84 : i1 to i32
    %c0_i32_37 = arith.constant 0 : i32
    %86 = arith.cmpi ne, %85, %c0_i32_37 : i32
    scf.if %86 {
      %93 = arith.index_cast %83 : i32 to index
      %c0_42 = arith.constant 0 : index
      %94 = vector.load %arg17[%93, %c0_42] : memref<8x128xf32, #tpu.memory_space<vmem>>, vector<8x128xf32>
      tpu.vector_store %arg17[%93, %c0_42], %81 {strides = array<i32>} : memref<8x128xf32, #tpu.memory_space<vmem>>, vector<8x128xf32>,
    } else {
    }
    %c0_i32_38 = arith.constant 0 : i32
    %87 = arith.cmpi ne, %arg1, %c0_i32_38 : i32
    %88 = arith.extui %87 : i1 to i32
    %c0_i32_39 = arith.constant 0 : i32
    %89 = arith.cmpi ne, %88, %c0_i32_39 : i32
    scf.if %89 {
      %93 = arith.index_cast %83 : i32 to index
      %c0_42 = arith.constant 0 : index
      %94 = vector.load %arg17[%93, %c0_42] : memref<8x128xf32, #tpu.memory_space<vmem>>, vector<8x128xf32>
      %95 = arith.addf %94, %81 : vector<8x128xf32>
      %96 = arith.index_cast %83 : i32 to index
      %c0_43 = arith.constant 0 : index
      %97 = vector.load %arg17[%96, %c0_43] : memref<8x128xf32, #tpu.memory_space<vmem>>, vector<8x128xf32>
      tpu.vector_store %arg17[%96, %c0_43], %95 {strides = array<i32>} : memref<8x128xf32, #tpu.memory_space<vmem>>, vector<8x128xf32>,
    } else {
    }
    %c1_i32_40 = arith.constant 1 : i32
    %90 = arith.cmpi eq, %arg1, %c1_i32_40 : i32
    %91 = arith.extui %90 : i1 to i32
    %c0_i32_41 = arith.constant 0 : i32
    %92 = arith.cmpi ne, %91, %c0_i32_41 : i32
    scf.if %92 {
      %93 = arith.index_cast %83 : i32 to index
      %c0_42 = arith.constant 0 : index
      %94 = vector.load %arg17[%93, %c0_42] : memref<8x128xf32, #tpu.memory_space<vmem>>, vector<8x128xf32>
      %c0_43 = arith.constant 0 : index
      %c0_44 = arith.constant 0 : index
      %95 = vector.load %arg13[%c0_43, %c0_44] : memref<1x128xf32, #tpu.memory_space<vmem>>, vector<1x128xf32>
      %96 = vector.broadcast %95 : vector<1x128xf32> to vector<8x128xf32>
      %97 = arith.addf %94, %96 : vector<8x128xf32>
      %c0_45 = arith.constant 0 : index
      %c0_46 = arith.constant 0 : index
      %c0_47 = arith.constant 0 : index
      %98 = vector.load %arg14[%c0_45, %c0_46, %c0_47] : memref<1x8x128xf32, #tpu.memory_space<vmem>>, vector<1x8x128xf32>
      %99 = vector.shape_cast %98 : vector<1x8x128xf32> to vector<8x128xf32>
      %100 = vector.shape_cast %97 : vector<8x128xf32> to vector<1x8x128xf32>
      tpu.vector_store %arg14[%c0_45, %c0_46, %c0_47], %100 {strides = array<i32>} : memref<1x8x128xf32, #tpu.memory_space<vmem>>, vector<1x8x128xf32>,
    } else {
    }
    return
  }
  func.func @transform_0(%arg0: i32, %arg1: i32, %arg2: i32) -> (i32, i32, i32) {
    %c0_i32 = arith.constant 0 : i32
    %c0_i32_0 = arith.constant 0 : i32
    return %arg0, %arg2, %c0_i32 : i32, i32, i32
  }
  func.func @transform_1(%arg0: i32, %arg1: i32, %arg2: i32) -> (i32, i32, i32) {
    %c0_i32 = arith.constant 0 : i32
    %c0_i32_0 = arith.constant 0 : i32
    %c0_i32_1 = arith.constant 0 : i32
    return %arg0, %c0_i32, %c0_i32_0 : i32, i32, i32
  }
  func.func @transform_2(%arg0: i32, %arg1: i32, %arg2: i32) -> (i32, i32, i32) {
    %c0_i32 = arith.constant 0 : i32
    %c0_i32_0 = arith.constant 0 : i32
    %c0_i32_1 = arith.constant 0 : i32
    return %arg0, %c0_i32, %c0_i32_0 : i32, i32, i32
  }
  func.func @transform_3(%arg0: i32, %arg1: i32, %arg2: i32) -> (i32, i32, i32) {
    %c0_i32 = arith.constant 0 : i32
    %c0_i32_0 = arith.constant 0 : i32
    %c0_i32_1 = arith.constant 0 : i32
    return %arg1, %c0_i32, %c0_i32_0 : i32, i32, i32
  }
  func.func @transform_4(%arg0: i32, %arg1: i32, %arg2: i32) -> (i32, i32, i32) {
    %c0_i32 = arith.constant 0 : i32
    %c0_i32_0 = arith.constant 0 : i32
    %c0_i32_1 = arith.constant 0 : i32
    return %arg1, %c0_i32, %c0_i32_0 : i32, i32, i32
  }
  func.func @transform_5(%arg0: i32, %arg1: i32, %arg2: i32) -> (i32, i32, i32) {
    %c0_i32 = arith.constant 0 : i32
    %c0_i32_0 = arith.constant 0 : i32
    %c0_i32_1 = arith.constant 0 : i32
    return %arg1, %c0_i32, %c0_i32_0 : i32, i32, i32
  }
  func.func @transform_6(%arg0: i32, %arg1: i32, %arg2: i32) -> (i32, i32, i32) {
    %c0_i32 = arith.constant 0 : i32
    %c0_i32_0 = arith.constant 0 : i32
    %c0_i32_1 = arith.constant 0 : i32
    return %arg1, %c0_i32, %c0_i32_0 : i32, i32, i32
  }
  func.func @transform_7(%arg0: i32, %arg1: i32, %arg2: i32) -> (i32, i32, i32) {
    %c0_i32 = arith.constant 0 : i32
    %c0_i32_0 = arith.constant 0 : i32
    %c0_i32_1 = arith.constant 0 : i32
    return %arg1, %c0_i32, %c0_i32_0 : i32, i32, i32
  }
  func.func @transform_8(%arg0: i32, %arg1: i32, %arg2: i32) -> (i32, i32, i32) {
    %c0_i32 = arith.constant 0 : i32
    %c0_i32_0 = arith.constant 0 : i32
    %c0_i32_1 = arith.constant 0 : i32
    return %arg1, %c0_i32, %c0_i32_0 : i32, i32, i32
  }
  func.func @transform_9(%arg0: i32, %arg1: i32, %arg2: i32) -> (i32, i32, i32) {
    %c0_i32 = arith.constant 0 : i32
    %c0_i32_0 = arith.constant 0 : i32
    %c0_i32_1 = arith.constant 0 : i32
    return %arg1, %c0_i32, %c0_i32_0 : i32, i32, i32
  }
  func.func @transform_10(%arg0: i32, %arg1: i32, %arg2: i32) -> (i32, i32) {
    %c0_i32 = arith.constant 0 : i32
    %c0_i32_0 = arith.constant 0 : i32
    %c0_i32_1 = arith.constant 0 : i32
    return %c0_i32, %c0_i32_0 : i32, i32
  }
  func.func @transform_11(%arg0: i32, %arg1: i32, %arg2: i32) -> (i32, i32, i32) {
    %c0_i32 = arith.constant 0 : i32
    %c0_i32_0 = arith.constant 0 : i32
    return %arg0, %arg2, %c0_i32 : i32, i32, i32
  }
}

</mosaic_0001>

<llo_original>
// kernel: tpu_custom_call.1
$region0: #{tpu_custom_call.1}
  #allocation0 [shape = 'u32[]', space=smem, size = 0x4, offset = 0x4, fixed_abs, tag = 'smem constant byte address 0x4 - core index']
  #allocation1 [shape = 'u32[144,128]{1,0:T(1,128)}', space=vmem, size = 0x12000, scoped, tag = 'internal scratch']
  #allocation2 [shape = 'bf16[8,256]{1,0:T(8,128)(2,1)}', space=vmem, size = 0x1000, scoped, tag = 'scratch operand']
  #allocation3 [shape = 'bf16[8,256]{1,0:T(8,128)(2,1)}', space=vmem, size = 0x1000, scoped, tag = 'scratch operand']
  #allocation4 [shape = 'f32[8,128]{1,0:T(8,128)}', space=vmem, size = 0x1000, scoped, tag = 'scratch operand']
  %s0 = inlined_call_operand.hbm [shape: bf16[2,8,128], index: 0, kind: input, shape index: {}]
  %s1 = inlined_call_operand.hbm [shape: bf16[2,8,128], index: 1, kind: input, shape index: {}]
  %s2 = inlined_call_operand.hbm [shape: bf16[2,8,128], index: 2, kind: input, shape index: {}]
  %s3 = inlined_call_operand.hbm [shape: bf16[2,128,256], index: 3, kind: input, shape index: {}]
  %s4 = inlined_call_operand.vmem [shape: f32[2,1,256], index: 4, kind: input, shape index: {}]
  %s5 = inlined_call_operand.hbm [shape: bf16[2,128,256], index: 5, kind: input, shape index: {}]
  %s6 = inlined_call_operand.vmem [shape: f32[2,1,256], index: 6, kind: input, shape index: {}]
  %s7 = inlined_call_operand.hbm [shape: bf16[2,128,256], index: 7, kind: input, shape index: {}]
  %s8 = inlined_call_operand.vmem [shape: f32[2,1,256], index: 8, kind: input, shape index: {}]
  %s9 = inlined_call_operand.hbm [shape: bf16[2,256,128], index: 9, kind: input, shape index: {}]
  %s10 = inlined_call_operand.vmem [shape: f32[1,128], index: 10, kind: input, shape index: {}]
  %s11 = inlined_call_operand.hbm [shape: f32[2,8,128], index: 11, kind: output, shape index: {}]
  %s12 = sld [smem:[#allocation0]]
  $region121: #{tpu_custom_call.1} parent=0
    _
  %s14 = ssub.s32 1, %s12
  %s15 = scalar_select 0, %s14, %s12
  $region1: #{tpu_custom_call.1} parent=0
    #allocation5 [shape = 'u8[4096]{0}', space=vmem, size = 0x1000, scoped, tag = 'input window, operand 0']
    #allocation6 [shape = 's32[2]{0}', space=sflag, size = 0x8, scoped, tag = 'scoped memory for tpu_custom_call.1']
    #allocation7 [shape = 's32[2]{0}', space=sflag, size = 0x8, scoped, tag = 'scoped memory for tpu_custom_call.1']
    #allocation8 [shape = 'u8[4096]{0}', space=vmem, size = 0x1000, scoped, tag = 'input window, operand 1']
    #allocation9 [shape = 's32[2]{0}', space=sflag, size = 0x8, scoped, tag = 'scoped memory for tpu_custom_call.1']
    #allocation10 [shape = 'u8[4096]{0}', space=vmem, size = 0x1000, scoped, tag = 'input window, operand 2']
    #allocation11 [shape = 'u8[131072]{0}', space=vmem, size = 0x20000, scoped, tag = 'input window, operand 3']
    #allocation12 [shape = 's32[2]{0}', space=sflag, size = 0x8, scoped, tag = 'scoped memory for tpu_custom_call.1']
    #allocation13 [shape = 'u8[131072]{0}', space=vmem, size = 0x20000, scoped, tag = 'input window, operand 5']
    #allocation14 [shape = 'u8[131072]{0}', space=vmem, size = 0x20000, scoped, tag = 'input window, operand 7']
    #allocation15 [shape = 's32[2]{0}', space=sflag, size = 0x8, scoped, tag = 'scoped memory for tpu_custom_call.1']
    #allocation16 [shape = 'u8[131072]{0}', space=vmem, size = 0x20000, scoped, tag = 'input window, operand 9']
    #allocation17 [shape = 'u8[8192]{0}', space=vmem, size = 0x2000, scoped, tag = 'output window, operand 0']
    %16 = vsyncpa [#allocation6], 0
    %s17 = scalar_lea.sflag [#allocation6], 1
    %18 = vsyncpa %s17, 0
    %19 = vsyncpa [#allocation9], 0
    %s20 = scalar_lea.sflag [#allocation9], 1
    %21 = vsyncpa %s20, 0
    %22 = vsyncpa [#allocation12], 0
    %s23 = scalar_lea.sflag [#allocation12], 1
    %24 = vsyncpa %s23, 0
    %25 = vsyncpa [#allocation15], 0
    %s26 = scalar_lea.sflag [#allocation15], 1
    %27 = vsyncpa %s26, 0
    %28 = vsyncpa [#allocation7], 0
    %s29 = scalar_lea.sflag [#allocation7], 1
    %30 = vsyncpa %s29, 0
    loop: start=0, step=1, limit=6
    $region2: #{tpu_custom_call.1} parent=1 // loop_pre_header
      _
    $region3: #{tpu_custom_call.1} parent=1 // loop_header
      %s32 = sphi 0, %s36
      %p33 = scmp.ge.s32.totalorder %s32, 6
      %s39 = sphi 0, %s58
      %s40 = sphi 0, %s54
      %s41 = sphi 0, %s50
      %s42 = sphi 0, %s39
      %s43 = sphi 0, %s40
      %s44 = sphi 0, %s41
      %s45 = sphi 0, %s42
      %s46 = sphi 0, %s43
      %s47 = sphi 0, %s44
      %s63 = sphi 0, %s65
      %s66 = sphi 0, %s63
      %s67 = sphi 0, %s66
      %s83 = sphi 0, %s67
      %s89 = sphi 0, %s91
      %s92 = sphi 0, %s89
      %s93 = sphi 0, %s92
      %s109 = sphi 0, %s93
      %s115 = sphi 0, %s117
      %s118 = sphi 0, %s115
      %s119 = sphi 0, %s118
      %s135 = sphi 0, %s119
      %s141 = sphi 0, %s143
      %s144 = sphi 0, %s141
      %s145 = sphi 0, %s144
      %s161 = sphi 0, %s145
      %s167 = sphi 0, %s169
      %s170 = sphi 0, %s167
      %s171 = sphi 0, %s170
      %s187 = sphi 0, %s171
      %s193 = sphi 0, %s195
      %s196 = sphi 0, %s193
      %s197 = sphi 0, %s196
      %s213 = sphi 0, %s197
      %s219 = sphi 0, %s221
      %s222 = sphi 0, %s219
      %s223 = sphi 0, %s222
      %s239 = sphi 0, %s223
      %s245 = sphi 0, %s247
      %s248 = sphi 0, %s245
      %s249 = sphi 0, %s248
      %s265 = sphi 0, %s249
      %s271 = sphi 0, %s273
      %s274 = sphi 0, %s271
      %s275 = sphi 0, %s274
      %s291 = sphi 0, %s275
      %s297 = sphi 0, %s299
      %s300 = sphi 0, %s297
      %s301 = sphi 0, %s300
      %s317 = sphi 0, %s301
      %s321 = sphi 0, %s321
      %s323 = sphi 0, %s321
      %s324 = sphi 0, %s323
      %s338 = sphi 0, %s324
      %s346 = sphi 0, %s348
      %s349 = sphi 0, %s346
      %s350 = sphi 0, %s349
      %s366 = sphi 0, %s350
    $region4: #{tpu_custom_call.1} parent=1 // loop_header_branch
      %35 = sbr.rel (%p33) target = $region8
    $region5: #{tpu_custom_call.1} parent=1 // loop_body
      %s37 = ssub.s32 %s32, 1
      %s38 = ssub.s32 %s32, 2
      %s48 = sadd.s32 1, %s41
      %p49 = scmp.ge.s32.totalorder %s48, 1
      %s50 = scalar_select %p49, 0, %s48
      %s51 = sadd.s32 1, %s40
      %s52 = scalar_select %p49, %s51, %s40
      %p53 = scmp.ge.s32.totalorder %s52, 2
      %s54 = scalar_select %p53, 0, %s52
      %s55 = sadd.s32 1, %s39
      %s56 = scalar_select %p53, %s55, %s39
      %p57 = scmp.ge.s32.totalorder %s56, 2
      %s58 = scalar_select %p57, 0, %s56
      %s59 = ssub.s32 %s39, %s58
      %s60 = ssub.s32 %s41, %s50
      %s61 = sor.u32 %s59, %s60
      %p62 = scmp.eq.s32.totalorder %s61, 0
      %s64 = sadd.s32 %s63, 1
      %s65 = scalar_select %p62, %s63, %s64
      %p68 = pneg %p62
      %p69 = scmp.eq.s32.totalorder %s32, 3
      %p70 = por %p68, %p69
      %p71 = scmp.ne.s32.totalorder %s63, %s66
      %p72 = scmp.eq.s32.totalorder %s32, 0
      %p73 = por %p71, %p72
      %p74 = scmp.ne.s32.totalorder %s63, %s66
      %p75 = scmp.eq.s32.totalorder %s37, 3
      %p76 = por %p74, %p75
      %p77 = scmp.ne.s32.totalorder %s66, %s67
      %p78 = scmp.eq.s32.totalorder %s37, 0
      %p79 = por %p77, %p78
      %p80 = scmp.ne.s32.totalorder %s66, %s67
      %p81 = scmp.eq.s32.totalorder %s38, 3
      %p82 = por %p80, %p81
      %p84 = scmp.ne.s32.totalorder %s67, %s83
      %p85 = scmp.eq.s32.totalorder %s38, 0
      %p86 = por %p84, %p85
      %s87 = ssub.s32 %s39, %s58
      %p88 = scmp.eq.s32.totalorder %s87, 0
      %s90 = sadd.s32 %s89, 1
      %s91 = scalar_select %p88, %s89, %s90
      %p94 = pneg %p88
      %p95 = scmp.eq.s32.totalorder %s32, 3
      %p96 = por %p94, %p95
      %p97 = scmp.ne.s32.totalorder %s89, %s92
      %p98 = scmp.eq.s32.totalorder %s32, 0
      %p99 = por %p97, %p98
      %p100 = scmp.ne.s32.totalorder %s89, %s92
      %p101 = scmp.eq.s32.totalorder %s37, 3
      %p102 = por %p100, %p101
      %p103 = scmp.ne.s32.totalorder %s92, %s93
      %p104 = scmp.eq.s32.totalorder %s37, 0
      %p105 = por %p103, %p104
      %p106 = scmp.ne.s32.totalorder %s92, %s93
      %p107 = scmp.eq.s32.totalorder %s38, 3
      %p108 = por %p106, %p107
      %p110 = scmp.ne.s32.totalorder %s93, %s109
      %p111 = scmp.eq.s32.totalorder %s38, 0
      %p112 = por %p110, %p111
      %s113 = ssub.s32 %s39, %s58
      %p114 = scmp.eq.s32.totalorder %s113, 0
      %s116 = sadd.s32 %s115, 1
      %s117 = scalar_select %p114, %s115, %s116
      %p120 = pneg %p114
      %p121 = scmp.eq.s32.totalorder %s32, 3
      %p122 = por %p120, %p121
      %p123 = scmp.ne.s32.totalorder %s115, %s118
      %p124 = scmp.eq.s32.totalorder %s32, 0
      %p125 = por %p123, %p124
      %p126 = scmp.ne.s32.totalorder %s115, %s118
      %p127 = scmp.eq.s32.totalorder %s37, 3
      %p128 = por %p126, %p127
      %p129 = scmp.ne.s32.totalorder %s118, %s119
      %p130 = scmp.eq.s32.totalorder %s37, 0
      %p131 = por %p129, %p130
      %p132 = scmp.ne.s32.totalorder %s118, %s119
      %p133 = scmp.eq.s32.totalorder %s38, 3
      %p134 = por %p132, %p133
      %p136 = scmp.ne.s32.totalorder %s119, %s135
      %p137 = scmp.eq.s32.totalorder %s38, 0
      %p138 = por %p136, %p137
      %s139 = ssub.s32 %s40, %s54
      %p140 = scmp.eq.s32.totalorder %s139, 0
      %s142 = sadd.s32 %s141, 1
      %s143 = scalar_select %p140, %s141, %s142
      %p146 = pneg %p140
      %p147 = scmp.eq.s32.totalorder %s32, 3
      %p148 = por %p146, %p147
      %p149 = scmp.ne.s32.totalorder %s141, %s144
      %p150 = scmp.eq.s32.totalorder %s32, 0
      %p151 = por %p149, %p150
      %p152 = scmp.ne.s32.totalorder %s141, %s144
      %p153 = scmp.eq.s32.totalorder %s37, 3
      %p154 = por %p152, %p153
      %p155 = scmp.ne.s32.totalorder %s144, %s145
      %p156 = scmp.eq.s32.totalorder %s37, 0
      %p157 = por %p155, %p156
      %p158 = scmp.ne.s32.totalorder %s144, %s145
      %p159 = scmp.eq.s32.totalorder %s38, 3
      %p160 = por %p158, %p159
      %p162 = scmp.ne.s32.totalorder %s145, %s161
      %p163 = scmp.eq.s32.totalorder %s38, 0
      %p164 = por %p162, %p163
      %s165 = ssub.s32 %s40, %s54
      %p166 = scmp.eq.s32.totalorder %s165, 0
      %s168 = sadd.s32 %s167, 1
      %s169 = scalar_select %p166, %s167, %s168
      %p172 = pneg %p166
      %p173 = scmp.eq.s32.totalorder %s32, 3
      %p174 = por %p172, %p173
      %p175 = scmp.ne.s32.totalorder %s167, %s170
      %p176 = scmp.eq.s32.totalorder %s32, 0
      %p177 = por %p175, %p176
      %p178 = scmp.ne.s32.totalorder %s167, %s170
      %p179 = scmp.eq.s32.totalorder %s37, 3
      %p180 = por %p178, %p179
      %p181 = scmp.ne.s32.totalorder %s170, %s171
      %p182 = scmp.eq.s32.totalorder %s37, 0
      %p183 = por %p181, %p182
      %p184 = scmp.ne.s32.totalorder %s170, %s171
      %p185 = scmp.eq.s32.totalorder %s38, 3
      %p186 = por %p184, %p185
      %p188 = scmp.ne.s32.totalorder %s171, %s187
      %p189 = scmp.eq.s32.totalorder %s38, 0
      %p190 = por %p188, %p189
      %s191 = ssub.s32 %s40, %s54
      %p192 = scmp.eq.s32.totalorder %s191, 0
      %s194 = sadd.s32 %s193, 1
      %s195 = scalar_select %p192, %s193, %s194
      %p198 = pneg %p192
      %p199 = scmp.eq.s32.totalorder %s32, 3
      %p200 = por %p198, %p199
      %p201 = scmp.ne.s32.totalorder %s193, %s196
      %p202 = scmp.eq.s32.totalorder %s32, 0
      %p203 = por %p201, %p202
      %p204 = scmp.ne.s32.totalorder %s193, %s196
      %p205 = scmp.eq.s32.totalorder %s37, 3
      %p206 = por %p204, %p205
      %p207 = scmp.ne.s32.totalorder %s196, %s197
      %p208 = scmp.eq.s32.totalorder %s37, 0
      %p209 = por %p207, %p208
      %p210 = scmp.ne.s32.totalorder %s196, %s197
      %p211 = scmp.eq.s32.totalorder %s38, 3
      %p212 = por %p210, %p211
      %p214 = scmp.ne.s32.totalorder %s197, %s213
      %p215 = scmp.eq.s32.totalorder %s38, 0
      %p216 = por %p214, %p215
      %s217 = ssub.s32 %s40, %s54
      %p218 = scmp.eq.s32.totalorder %s217, 0
      %s220 = sadd.s32 %s219, 1
      %s221 = scalar_select %p218, %s219, %s220
      %p224 = pneg %p218
      %p225 = scmp.eq.s32.totalorder %s32, 3
      %p226 = por %p224, %p225
      %p227 = scmp.ne.s32.totalorder %s219, %s222
      %p228 = scmp.eq.s32.totalorder %s32, 0
      %p229 = por %p227, %p228
      %p230 = scmp.ne.s32.totalorder %s219, %s222
      %p231 = scmp.eq.s32.totalorder %s37, 3
      %p232 = por %p230, %p231
      %p233 = scmp.ne.s32.totalorder %s222, %s223
      %p234 = scmp.eq.s32.totalorder %s37, 0
      %p235 = por %p233, %p234
      %p236 = scmp.ne.s32.totalorder %s222, %s223
      %p237 = scmp.eq.s32.totalorder %s38, 3
      %p238 = por %p236, %p237
      %p240 = scmp.ne.s32.totalorder %s223, %s239
      %p241 = scmp.eq.s32.totalorder %s38, 0
      %p242 = por %p240, %p241
      %s243 = ssub.s32 %s40, %s54
      %p244 = scmp.eq.s32.totalorder %s243, 0
      %s246 = sadd.s32 %s245, 1
      %s247 = scalar_select %p244, %s245, %s246
      %p250 = pneg %p244
      %p251 = scmp.eq.s32.totalorder %s32, 3
      %p252 = por %p250, %p251
      %p253 = scmp.ne.s32.totalorder %s245, %s248
      %p254 = scmp.eq.s32.totalorder %s32, 0
      %p255 = por %p253, %p254
      %p256 = scmp.ne.s32.totalorder %s245, %s248
      %p257 = scmp.eq.s32.totalorder %s37, 3
      %p258 = por %p256, %p257
      %p259 = scmp.ne.s32.totalorder %s248, %s249
      %p260 = scmp.eq.s32.totalorder %s37, 0
      %p261 = por %p259, %p260
      %p262 = scmp.ne.s32.totalorder %s248, %s249
      %p263 = scmp.eq.s32.totalorder %s38, 3
      %p264 = por %p262, %p263
      %p266 = scmp.ne.s32.totalorder %s249, %s265
      %p267 = scmp.eq.s32.totalorder %s38, 0
      %p268 = por %p266, %p267
      %s269 = ssub.s32 %s40, %s54
      %p270 = scmp.eq.s32.totalorder %s269, 0
      %s272 = sadd.s32 %s271, 1
      %s273 = scalar_select %p270, %s271, %s272
      %p276 = pneg %p270
      %p277 = scmp.eq.s32.totalorder %s32, 3
      %p278 = por %p276, %p277
      %p279 = scmp.ne.s32.totalorder %s271, %s274
      %p280 = scmp.eq.s32.totalorder %s32, 0
      %p281 = por %p279, %p280
      %p282 = scmp.ne.s32.totalorder %s271, %s274
      %p283 = scmp.eq.s32.totalorder %s37, 3
      %p284 = por %p282, %p283
      %p285 = scmp.ne.s32.totalorder %s274, %s275
      %p286 = scmp.eq.s32.totalorder %s37, 0
      %p287 = por %p285, %p286
      %p288 = scmp.ne.s32.totalorder %s274, %s275
      %p289 = scmp.eq.s32.totalorder %s38, 3
      %p290 = por %p288, %p289
      %p292 = scmp.ne.s32.totalorder %s275, %s291
      %p293 = scmp.eq.s32.totalorder %s38, 0
      %p294 = por %p292, %p293
      %s295 = ssub.s32 %s40, %s54
      %p296 = scmp.eq.s32.totalorder %s295, 0
      %s298 = sadd.s32 %s297, 1
      %s299 = scalar_select %p296, %s297, %s298
      %p302 = pneg %p296
      %p303 = scmp.eq.s32.totalorder %s32, 3
      %p304 = por %p302, %p303
      %p305 = scmp.ne.s32.totalorder %s297, %s300
      %p306 = scmp.eq.s32.totalorder %s32, 0
      %p307 = por %p305, %p306
      %p308 = scmp.ne.s32.totalorder %s297, %s300
      %p309 = scmp.eq.s32.totalorder %s37, 3
      %p310 = por %p308, %p309
      %p311 = scmp.ne.s32.totalorder %s300, %s301
      %p312 = scmp.eq.s32.totalorder %s37, 0
      %p313 = por %p311, %p312
      %p314 = scmp.ne.s32.totalorder %s300, %s301
      %p315 = scmp.eq.s32.totalorder %s38, 3
      %p316 = por %p314, %p315
      %p318 = scmp.ne.s32.totalorder %s301, %s317
      %p319 = scmp.eq.s32.totalorder %s38, 0
      %p320 = por %p318, %p319
      %s322 = sadd.s32 %s321, 1
      %p325 = scmp.eq.s32.totalorder %s32, 3
      %p326 = scmp.ne.s32.totalorder %s321, %s323
      %p327 = scmp.eq.s32.totalorder %s32, 0
      %p328 = por %p326, %p327
      %p329 = scmp.ne.s32.totalorder %s321, %s323
      %p330 = scmp.eq.s32.totalorder %s37, 3
      %p331 = por %p329, %p330
      %p332 = scmp.ne.s32.totalorder %s323, %s324
      %p333 = scmp.eq.s32.totalorder %s37, 0
      %p334 = por %p332, %p333
      %p335 = scmp.ne.s32.totalorder %s323, %s324
      %p336 = scmp.eq.s32.totalorder %s38, 3
      %p337 = por %p335, %p336
      %p339 = scmp.ne.s32.totalorder %s324, %s338
      %p340 = scmp.eq.s32.totalorder %s38, 0
      %p341 = por %p339, %p340
      %s342 = ssub.s32 %s39, %s58
      %s343 = ssub.s32 %s41, %s50
      %s344 = sor.u32 %s342, %s343
      %p345 = scmp.eq.s32.totalorder %s344, 0
      %s347 = sadd.s32 %s346, 1
      %s348 = scalar_select %p345, %s346, %s347
      %p351 = pneg %p345
      %p352 = scmp.eq.s32.totalorder %s32, 3
      %p353 = por %p351, %p352
      %p354 = scmp.ne.s32.totalorder %s346, %s349
      %p355 = scmp.eq.s32.totalorder %s32, 0
      %p356 = por %p354, %p355
      %p357 = scmp.ne.s32.totalorder %s346, %s349
      %p358 = scmp.eq.s32.totalorder %s37, 3
      %p359 = por %p357, %p358
      %p360 = scmp.ne.s32.totalorder %s349, %s350
      %p361 = scmp.eq.s32.totalorder %s37, 0
      %p362 = por %p360, %p361
      %p363 = scmp.ne.s32.totalorder %s349, %s350
      %p364 = scmp.eq.s32.totalorder %s38, 3
      %p365 = por %p363, %p364
      %p367 = scmp.ne.s32.totalorder %s350, %s366
      %p368 = scmp.eq.s32.totalorder %s38, 0
      %p369 = por %p367, %p368
      %p370 = scmp.le.s32.totalorder 1, %s32
      %p371 = scmp.lt.s32.totalorder %s32, 5
      %p372 = pnand %p370, %p371
      %p373 = pneg %p372
      // Predicated region
      $region9: #{tpu_custom_call.1} parent=5 // pred_check
        _
      $region10: #{tpu_custom_call.1} parent=5 // pred_check_branch
        %375 = sbr.rel (%p372) target = $region12
      $region11: #{tpu_custom_call.1} parent=5 // pred_region
        %s376 = ssub.s32 %s32, 1
        // Predicated region
        $region13: #{tpu_custom_call.1} parent=11 // pred_check
          %p377 = pneg %p334
        $region14: #{tpu_custom_call.1} parent=11 // pred_check_branch
          %379 = sbr.rel (%p377) target = $region16
        $region15: #{tpu_custom_call.1} parent=11 // pred_region
          _
        $region16: #{tpu_custom_call.1} parent=11 // pred_fallthru
          _
      $region12: #{tpu_custom_call.1} parent=5 // pred_fallthru
        _
      %p380 = scmp.lt.s32.totalorder %s32, 4
      // Predicated region
      $region17: #{tpu_custom_call.1} parent=5 // pred_check
        %p381 = pneg %p380
      $region18: #{tpu_custom_call.1} parent=5 // pred_check_branch
        %383 = sbr.rel (%p381) target = $region20
      $region19: #{tpu_custom_call.1} parent=5 // pred_region
        // Predicated region
        $region21: #{tpu_custom_call.1} parent=19 // pred_check
          %p384 = pneg %p73
        $region22: #{tpu_custom_call.1} parent=19 // pred_check_branch
          %386 = sbr.rel (%p384) target = $region24
        $region23: #{tpu_custom_call.1} parent=19 // pred_region
          %s387 = sand.u32 %s63, 1
          %s388 = scalar_lea.sflag [#allocation6], %s387
          %s389 = sand.u32 %s63, 1
          %s390 = smul.addr %s389, 4
          %s391 = scalar_lea.vmem [#allocation5], %s390
          %s393 = ssub.s32 64, 64
          %394 = vsyncadd %s388, %s393
          %s395 = sadd.s32 %s41, %s39
          %s396 = smul.addr %s395, 64
          %s397 = scalar_lea.hbm %s0, %s396
          %s399 = sshll.u32 %s391, 4
          %s400 = int_to_ptr.vmem [resolvable:$true] %s399
          %402 = dma.hbm_to_vmem [thread:$0]  %s397, 64, %s400, %s388
        $region24: #{tpu_custom_call.1} parent=19 // pred_fallthru
          _
        // Predicated region
        $region25: #{tpu_custom_call.1} parent=19 // pred_check
          %p403 = pneg %p99
        $region26: #{tpu_custom_call.1} parent=19 // pred_check_branch
          %405 = sbr.rel (%p403) target = $region28
        $region27: #{tpu_custom_call.1} parent=19 // pred_region
          %s406 = sand.u32 %s32, 1
          %s407 = scalar_lea.sflag [#allocation9], %s406
          %s408 = sand.u32 %s89, 1
          %s409 = smul.addr %s408, 4
          %s410 = scalar_lea.vmem [#allocation8], %s409
          %s412 = ssub.s32 64, 64
          %413 = vsyncadd %s407, %s412
          %s414 = smul.addr %s39, 64
          %s415 = scalar_lea.hbm %s1, %s414
          %s417 = sshll.u32 %s410, 4
          %s418 = int_to_ptr.vmem [resolvable:$true] %s417
          %420 = dma.hbm_to_vmem [thread:$0]  %s415, 64, %s418, %s407
        $region28: #{tpu_custom_call.1} parent=19 // pred_fallthru
          _
        // Predicated region
        $region29: #{tpu_custom_call.1} parent=19 // pred_check
          %p421 = pneg %p125
        $region30: #{tpu_custom_call.1} parent=19 // pred_check_branch
          %423 = sbr.rel (%p421) target = $region32
        $region31: #{tpu_custom_call.1} parent=19 // pred_region
          %s424 = sand.u32 %s32, 1
          %s425 = scalar_lea.sflag [#allocation9], %s424
          %s426 = sand.u32 %s115, 1
          %s427 = smul.addr %s426, 4
          %s428 = scalar_lea.vmem [#allocation10], %s427
          %s430 = ssub.s32 64, 64
          %431 = vsyncadd %s425, %s430
          %s432 = smul.addr %s39, 64
          %s433 = scalar_lea.hbm %s2, %s432
          %s435 = sshll.u32 %s428, 4
          %s436 = int_to_ptr.vmem [resolvable:$true] %s435
          %438 = dma.hbm_to_vmem [thread:$0]  %s433, 64, %s436, %s425
        $region32: #{tpu_custom_call.1} parent=19 // pred_fallthru
          _
        // Predicated region
        $region33: #{tpu_custom_call.1} parent=19 // pred_check
          %p439 = pneg %p151
        $region34: #{tpu_custom_call.1} parent=19 // pred_check_branch
          %441 = sbr.rel (%p439) target = $region36
        $region35: #{tpu_custom_call.1} parent=19 // pred_region
          %s442 = sand.u32 %s32, 1
          %s443 = scalar_lea.sflag [#allocation12], %s442
          %s444 = sand.u32 %s141, 1
          %s445 = smul.addr %s444, 128
          %s446 = scalar_lea.vmem [#allocation11], %s445
          %s448 = ssub.s32 2048, 2048
          %449 = vsyncadd %s443, %s448
          %s450 = smul.addr %s40, 32
          %s451 = smul.addr %s450, 64
          %s452 = scalar_lea.hbm %s3, %s451
          %s453 = sshll.u32 %s446, 4
          %s454 = int_to_ptr.vmem [resolvable:$true] %s453
          %459 = dma.hbm_to_vmem [thread:$0]  %s452, 2048, %s454, %s443, 128, 128, 8
        $region36: #{tpu_custom_call.1} parent=19 // pred_fallthru
          _
        // Predicated region
        $region37: #{tpu_custom_call.1} parent=19 // pred_check
          %p460 = pneg %p177
        $region38: #{tpu_custom_call.1} parent=19 // pred_check_branch
          %462 = sbr.rel (%p460) target = $region40
        $region39: #{tpu_custom_call.1} parent=19 // pred_region
          %p463 = scmp.lt.s32.totalorder %s40, 1
          %s464 = scalar_select %p463, %s40, 1
          %s465 = smul.addr %s464, 2
          %s466 = scalar_lea.vmem %s4, %s465
        $region40: #{tpu_custom_call.1} parent=19 // pred_fallthru
          _
        // Predicated region
        $region41: #{tpu_custom_call.1} parent=19 // pred_check
          %p467 = pneg %p203
        $region42: #{tpu_custom_call.1} parent=19 // pred_check_branch
          %469 = sbr.rel (%p467) target = $region44
        $region43: #{tpu_custom_call.1} parent=19 // pred_region
          %s470 = sand.u32 %s32, 1
          %s471 = scalar_lea.sflag [#allocation12], %s470
          %s472 = sand.u32 %s193, 1
          %s473 = smul.addr %s472, 128
          %s474 = scalar_lea.vmem [#allocation13], %s473
          %s476 = ssub.s32 2048, 2048
          %477 = vsyncadd %s471, %s476
          %s478 = smul.addr %s40, 32
          %s479 = smul.addr %s478, 64
          %s480 = scalar_lea.hbm %s5, %s479
          %s481 = sshll.u32 %s474, 4
          %s482 = int_to_ptr.vmem [resolvable:$true] %s481
          %487 = dma.hbm_to_vmem [thread:$0]  %s480, 2048, %s482, %s471, 128, 128, 8
        $region44: #{tpu_custom_call.1} parent=19 // pred_fallthru
          _
        // Predicated region
        $region45: #{tpu_custom_call.1} parent=19 // pred_check
          %p488 = pneg %p229
        $region46: #{tpu_custom_call.1} parent=19 // pred_check_branch
          %490 = sbr.rel (%p488) target = $region48
        $region47: #{tpu_custom_call.1} parent=19 // pred_region
          %p491 = scmp.lt.s32.totalorder %s40, 1
          %s492 = scalar_select %p491, %s40, 1
          %s493 = smul.addr %s492, 2
          %s494 = scalar_lea.vmem %s6, %s493
        $region48: #{tpu_custom_call.1} parent=19 // pred_fallthru
          _
        // Predicated region
        $region49: #{tpu_custom_call.1} parent=19 // pred_check
          %p495 = pneg %p255
        $region50: #{tpu_custom_call.1} parent=19 // pred_check_branch
          %497 = sbr.rel (%p495) target = $region52
        $region51: #{tpu_custom_call.1} parent=19 // pred_region
          %s498 = sand.u32 %s32, 1
          %s499 = scalar_lea.sflag [#allocation15], %s498
          %s500 = sand.u32 %s245, 1
          %s501 = smul.addr %s500, 128
          %s502 = scalar_lea.vmem [#allocation14], %s501
          %s504 = ssub.s32 2048, 2048
          %505 = vsyncadd %s499, %s504
          %s506 = smul.addr %s40, 32
          %s507 = smul.addr %s506, 64
          %s508 = scalar_lea.hbm %s7, %s507
          %s509 = sshll.u32 %s502, 4
          %s510 = int_to_ptr.vmem [resolvable:$true] %s509
          %515 = dma.hbm_to_vmem [thread:$0]  %s508, 2048, %s510, %s499, 128, 128, 8
        $region52: #{tpu_custom_call.1} parent=19 // pred_fallthru
          _
        // Predicated region
        $region53: #{tpu_custom_call.1} parent=19 // pred_check
          %p516 = pneg %p281
        $region54: #{tpu_custom_call.1} parent=19 // pred_check_branch
          %518 = sbr.rel (%p516) target = $region56
        $region55: #{tpu_custom_call.1} parent=19 // pred_region
          %p519 = scmp.lt.s32.totalorder %s40, 1
          %s520 = scalar_select %p519, %s40, 1
          %s521 = smul.addr %s520, 2
          %s522 = scalar_lea.vmem %s8, %s521
        $region56: #{tpu_custom_call.1} parent=19 // pred_fallthru
          _
        // Predicated region
        $region57: #{tpu_custom_call.1} parent=19 // pred_check
          %p523 = pneg %p307
        $region58: #{tpu_custom_call.1} parent=19 // pred_check_branch
          %525 = sbr.rel (%p523) target = $region60
        $region59: #{tpu_custom_call.1} parent=19 // pred_region
          %s526 = sand.u32 %s32, 1
          %s527 = scalar_lea.sflag [#allocation15], %s526
          %s528 = sand.u32 %s297, 1
          %s529 = smul.addr %s528, 128
          %s530 = scalar_lea.vmem [#allocation16], %s529
          %s532 = ssub.s32 2048, 2048
          %533 = vsyncadd %s527, %s532
          %s534 = smul.addr %s40, 32
          %s535 = smul.addr %s534, 64
          %s536 = scalar_lea.hbm %s9, %s535
          %s537 = sshll.u32 %s530, 4
          %s538 = int_to_ptr.vmem [resolvable:$true] %s537
          %543 = dma.hbm_to_vmem [thread:$0]  %s536, 2048, %s538, %s527, 64, 64, 4
        $region60: #{tpu_custom_call.1} parent=19 // pred_fallthru
          _
      $region20: #{tpu_custom_call.1} parent=5 // pred_fallthru
        _
      %p544 = scmp.le.s32.totalorder 1, %s32
      %p545 = scmp.lt.s32.totalorder %s32, 5
      %p546 = pnand %p544, %p545
      %p547 = pneg %p546
      // Predicated region
      $region61: #{tpu_custom_call.1} parent=5 // pred_check
        _
      $region62: #{tpu_custom_call.1} parent=5 // pred_check_branch
        %549 = sbr.rel (%p546) target = $region64
      $region63: #{tpu_custom_call.1} parent=5 // pred_region
        %s550 = ssub.s32 %s32, 1
        %s551 = sand.u32 %s66, 1
        %s552 = scalar_lea.sflag [#allocation6], %s551
        %s553 = sand.u32 %s66, 1
        %s554 = smul.addr %s553, 4
        %s555 = scalar_lea.vmem [#allocation5], %s554
        // Predicated region
        $region65: #{tpu_custom_call.1} parent=63 // pred_check
          %p556 = pneg %p79
        $region66: #{tpu_custom_call.1} parent=63 // pred_check_branch
          %558 = sbr.rel (%p556) target = $region68
        $region67: #{tpu_custom_call.1} parent=63 // pred_region
          %559 = dma.done %s552, 64
        $region68: #{tpu_custom_call.1} parent=63 // pred_fallthru
          _
        %s560 = sand.u32 %s37, 1
        %s561 = scalar_lea.sflag [#allocation9], %s560
        %s562 = sand.u32 %s92, 1
        %s563 = smul.addr %s562, 4
        %s564 = scalar_lea.vmem [#allocation8], %s563
        // Predicated region
        $region69: #{tpu_custom_call.1} parent=63 // pred_check
          %p565 = pneg %p105
        $region70: #{tpu_custom_call.1} parent=63 // pred_check_branch
          %567 = sbr.rel (%p565) target = $region72
        $region71: #{tpu_custom_call.1} parent=63 // pred_region
          %568 = dma.done %s561, 64
        $region72: #{tpu_custom_call.1} parent=63 // pred_fallthru
          _
        %s569 = sand.u32 %s37, 1
        %s570 = scalar_lea.sflag [#allocation9], %s569
        %s571 = sand.u32 %s118, 1
        %s572 = smul.addr %s571, 4
        %s573 = scalar_lea.vmem [#allocation10], %s572
        // Predicated region
        $region73: #{tpu_custom_call.1} parent=63 // pred_check
          %p574 = pneg %p131
        $region74: #{tpu_custom_call.1} parent=63 // pred_check_branch
          %576 = sbr.rel (%p574) target = $region76
        $region75: #{tpu_custom_call.1} parent=63 // pred_region
          %577 = dma.done %s570, 64
        $region76: #{tpu_custom_call.1} parent=63 // pred_fallthru
          _
        %s578 = sand.u32 %s37, 1
        %s579 = scalar_lea.sflag [#allocation12], %s578
        %s580 = sand.u32 %s144, 1
        %s581 = smul.addr %s580, 128
        %s582 = scalar_lea.vmem [#allocation11], %s581
        // Predicated region
        $region77: #{tpu_custom_call.1} parent=63 // pred_check
          %p583 = pneg %p157
        $region78: #{tpu_custom_call.1} parent=63 // pred_check_branch
          %585 = sbr.rel (%p583) target = $region80
        $region79: #{tpu_custom_call.1} parent=63 // pred_region
          %586 = dma.done %s579, 2048
        $region80: #{tpu_custom_call.1} parent=63 // pred_fallthru
          _
        %s587 = sand.u32 %s37, 1
        %s588 = scalar_lea.sflag [#allocation12], %s587
        %s589 = sand.u32 %s196, 1
        %s590 = smul.addr %s589, 128
        %s591 = scalar_lea.vmem [#allocation13], %s590
        // Predicated region
        $region81: #{tpu_custom_call.1} parent=63 // pred_check
          %p592 = pneg %p209
        $region82: #{tpu_custom_call.1} parent=63 // pred_check_branch
          %594 = sbr.rel (%p592) target = $region84
        $region83: #{tpu_custom_call.1} parent=63 // pred_region
          %595 = dma.done %s588, 2048
        $region84: #{tpu_custom_call.1} parent=63 // pred_fallthru
          _
        %s596 = sand.u32 %s37, 1
        %s597 = scalar_lea.sflag [#allocation15], %s596
        %s598 = sand.u32 %s248, 1
        %s599 = smul.addr %s598, 128
        %s600 = scalar_lea.vmem [#allocation14], %s599
        // Predicated region
        $region85: #{tpu_custom_call.1} parent=63 // pred_check
          %p601 = pneg %p261
        $region86: #{tpu_custom_call.1} parent=63 // pred_check_branch
          %603 = sbr.rel (%p601) target = $region88
        $region87: #{tpu_custom_call.1} parent=63 // pred_region
          %604 = dma.done %s597, 2048
        $region88: #{tpu_custom_call.1} parent=63 // pred_fallthru
          _
        %s605 = sand.u32 %s37, 1
        %s606 = scalar_lea.sflag [#allocation15], %s605
        %s607 = sand.u32 %s300, 1
        %s608 = smul.addr %s607, 128
        %s609 = scalar_lea.vmem [#allocation16], %s608
        // Predicated region
        $region89: #{tpu_custom_call.1} parent=63 // pred_check
          %p610 = pneg %p313
        $region90: #{tpu_custom_call.1} parent=63 // pred_check_branch
          %612 = sbr.rel (%p610) target = $region92
        $region91: #{tpu_custom_call.1} parent=63 // pred_region
          %613 = dma.done %s606, 2048
        $region92: #{tpu_custom_call.1} parent=63 // pred_fallthru
          _
        %s614 = sand.u32 %s66, 1
        %s615 = scalar_lea.sflag [#allocation6], %s614
        %s616 = sand.u32 %s66, 1
        %s617 = smul.addr %s616, 4
        %s618 = scalar_lea.vmem [#allocation5], %s617
        %p619 = pneg %p79
        %p620 = pneg %p76
        %s621 = sand.u32 %s37, 1
        %s622 = scalar_lea.sflag [#allocation9], %s621
        %s623 = sand.u32 %s92, 1
        %s624 = smul.addr %s623, 4
        %s625 = scalar_lea.vmem [#allocation8], %s624
        %p626 = pneg %p105
        %p627 = pneg %p102
        %s628 = sand.u32 %s37, 1
        %s629 = scalar_lea.sflag [#allocation9], %s628
        %s630 = sand.u32 %s118, 1
        %s631 = smul.addr %s630, 4
        %s632 = scalar_lea.vmem [#allocation10], %s631
        %p633 = pneg %p131
        %p634 = pneg %p128
        %s635 = sand.u32 %s37, 1
        %s636 = scalar_lea.sflag [#allocation12], %s635
        %s637 = sand.u32 %s144, 1
        %s638 = smul.addr %s637, 128
        %s639 = scalar_lea.vmem [#allocation11], %s638
        %p640 = pneg %p157
        %p641 = pneg %p154
        %p642 = scmp.lt.s32.totalorder %s43, 1
        %s643 = scalar_select %p642, %s43, 1
        %s644 = smul.addr %s643, 2
        %s645 = scalar_lea.vmem %s4, %s644
        %p646 = pneg %p183
        %p647 = pneg %p180
        %s648 = sand.u32 %s37, 1
        %s649 = scalar_lea.sflag [#allocation12], %s648
        %s650 = sand.u32 %s196, 1
        %s651 = smul.addr %s650, 128
        %s652 = scalar_lea.vmem [#allocation13], %s651
        %p653 = pneg %p209
        %p654 = pneg %p206
        %p655 = scmp.lt.s32.totalorder %s43, 1
        %s656 = scalar_select %p655, %s43, 1
        %s657 = smul.addr %s656, 2
        %s658 = scalar_lea.vmem %s6, %s657
        %p659 = pneg %p235
        %p660 = pneg %p232
        %s661 = sand.u32 %s37, 1
        %s662 = scalar_lea.sflag [#allocation15], %s661
        %s663 = sand.u32 %s248, 1
        %s664 = smul.addr %s663, 128
        %s665 = scalar_lea.vmem [#allocation14], %s664
        %p666 = pneg %p261
        %p667 = pneg %p258
        %p668 = scmp.lt.s32.totalorder %s43, 1
        %s669 = scalar_select %p668, %s43, 1
        %s670 = smul.addr %s669, 2
        %s671 = scalar_lea.vmem %s8, %s670
        %p672 = pneg %p287
        %p673 = pneg %p284
        %s674 = sand.u32 %s37, 1
        %s675 = scalar_lea.sflag [#allocation15], %s674
        %s676 = sand.u32 %s300, 1
        %s677 = smul.addr %s676, 128
        %s678 = scalar_lea.vmem [#allocation16], %s677
        %p679 = pneg %p313
        %p680 = pneg %p310
        %p681 = pneg %p334
        %p682 = pneg %p331
        %p683 = pneg %p362
        %p684 = pneg %p359
        %s685 = sand.u32 %s349, 1
        %s686 = scalar_lea.sflag [#allocation7], %s685
        %s687 = sand.u32 %s349, 1
        %s688 = smul.addr %s687, 8
        %s689 = scalar_lea.vmem [#allocation17], %s688
        %p690 = scmp.lt.s32.totalorder %s43, 1
        %s691 = scalar_select %p690, %s43, 1
        %s692 = smul.addr %s691, 2
        %s693 = scalar_lea.vmem %s4, %s692
        %p694 = scmp.lt.s32.totalorder %s43, 1
        %s695 = scalar_select %p694, %s43, 1
        %s696 = smul.addr %s695, 2
        %s697 = scalar_lea.vmem %s6, %s696
        %p698 = scmp.lt.s32.totalorder %s43, 1
        %s699 = scalar_select %p698, %s43, 1
        %s700 = smul.addr %s699, 2
        %s701 = scalar_lea.vmem %s8, %s700
        %p703 = scmp.eq.s32.totalorder %s44, 0
        // Predicated region
        $region93: #{tpu_custom_call.1} parent=63 // pred_check
          %p704 = pneg %p703
        $region94: #{tpu_custom_call.1} parent=63 // pred_check_branch
          %706 = sbr.rel (%p704) target = $region96
        $region95: #{tpu_custom_call.1} parent=63 // pred_region
          %v707 = vld [vmem:[%s564] sm:$0xf]
          %v708 = vld [vmem:[%s591] sm:$0xff]
          %v709 = vld [vmem:[%s591 + $0x8] sm:$0xff]
          %v710 = vld [vmem:[%s591 + $0x10] sm:$0xff]
          %v711 = vld [vmem:[%s591 + $0x18] sm:$0xff]
          %v712 = vld [vmem:[%s591 + $0x20] sm:$0xff]
          %v713 = vld [vmem:[%s591 + $0x28] sm:$0xff]
          %v714 = vld [vmem:[%s591 + $0x30] sm:$0xff]
          %v715 = vld [vmem:[%s591 + $0x38] sm:$0xff]
          %v716 = vld [vmem:[%s591 + $0x40] sm:$0xff]
          %v717 = vld [vmem:[%s591 + $0x48] sm:$0xff]
          %v718 = vld [vmem:[%s591 + $0x50] sm:$0xff]
          %v719 = vld [vmem:[%s591 + $0x58] sm:$0xff]
          %v720 = vld [vmem:[%s591 + $0x60] sm:$0xff]
          %v721 = vld [vmem:[%s591 + $0x68] sm:$0xff]
          %v722 = vld [vmem:[%s591 + $0x70] sm:$0xff]
          %v723 = vld [vmem:[%s591 + $0x78] sm:$0xff]
          %v724 = vld [vmem:[%s697] sm:$0x3]
          %v726 = vlaneseq
          %v727 = vshrl.u32 %v726, 7
          %v728 = vsub.s32 0, %v727
          %v729 = vrot.slane %v724, %v728
          %v730 = vlaneseq
          %v731 = vshrl.u32 %v730, 7
          %v732 = vsub.s32 1, %v731
          %v733 = vrot.slane %v724, %v732
          %v752 = vunpack.c.l.b16 %v708
          %v753 = vunpack.c.h.b16 %v708
          %v754 = vunpack.c.l.b16 %v709
          %v755 = vunpack.c.h.b16 %v709
          %v756 = vunpack.c.l.b16 %v710
          %v757 = vunpack.c.h.b16 %v710
          %v758 = vunpack.c.l.b16 %v711
          %v759 = vunpack.c.h.b16 %v711
          %v760 = vunpack.c.l.b16 %v712
          %v761 = vunpack.c.h.b16 %v712
          %v762 = vunpack.c.l.b16 %v713
          %v763 = vunpack.c.h.b16 %v713
          %v764 = vunpack.c.l.b16 %v714
          %v765 = vunpack.c.h.b16 %v714
          %v766 = vunpack.c.l.b16 %v715
          %v767 = vunpack.c.h.b16 %v715
          %v768 = vunpack.c.l.b16 %v716
          %v769 = vunpack.c.h.b16 %v716
          %v770 = vunpack.c.l.b16 %v717
          %v771 = vunpack.c.h.b16 %v717
          %v772 = vunpack.c.l.b16 %v718
          %v773 = vunpack.c.h.b16 %v718
          %v774 = vunpack.c.l.b16 %v719
          %v775 = vunpack.c.h.b16 %v719
          %v776 = vunpack.c.l.b16 %v720
          %v777 = vunpack.c.h.b16 %v720
          %v778 = vunpack.c.l.b16 %v721
          %v779 = vunpack.c.h.b16 %v721
          %v780 = vunpack.c.l.b16 %v722
          %v781 = vunpack.c.h.b16 %v722
          %v782 = vunpack.c.l.b16 %v723
          %v783 = vunpack.c.h.b16 %v723
          %v784 = vpack.c.b16 %v754, %v752
          %v785 = vpack.c.b16 %v755, %v753
          %v786 = vpack.c.b16 %v758, %v756
          %v787 = vpack.c.b16 %v759, %v757
          %v788 = vpack.c.b16 %v762, %v760
          %v789 = vpack.c.b16 %v763, %v761
          %v790 = vpack.c.b16 %v766, %v764
          %v791 = vpack.c.b16 %v767, %v765
          %v792 = vpack.c.b16 %v770, %v768
          %v793 = vpack.c.b16 %v771, %v769
          %v794 = vpack.c.b16 %v774, %v772
          %v795 = vpack.c.b16 %v775, %v773
          %v796 = vpack.c.b16 %v778, %v776
          %v797 = vpack.c.b16 %v779, %v777
          %v798 = vpack.c.b16 %v782, %v780
          %v799 = vpack.c.b16 %v783, %v781
          %816 = vmatprep.subr.bf16.mxu0 %v785
          %817 = vmatpush1.bf16.msra.mxu0 %v784
          %818 = vmatprep.subr.bf16.mxu0 %v787
          %819 = vmatpush1.bf16.msra.mxu0 %v786
          %820 = vmatprep.subr.bf16.mxu0 %v789
          %821 = vmatpush1.bf16.msra.mxu0 %v788
          %822 = vmatprep.subr.bf16.mxu0 %v791
          %823 = vmatpush1.bf16.msra.mxu0 %v790
          %824 = vmatprep.subr.bf16.mxu0 %v793
          %825 = vmatpush1.bf16.msra.mxu0 %v792
          %826 = vmatprep.subr.bf16.mxu0 %v795
          %827 = vmatpush1.bf16.msra.mxu0 %v794
          %828 = vmatprep.subr.bf16.mxu0 %v797
          %829 = vmatpush1.bf16.msra.mxu0 %v796
          %830 = vmatprep.subr.bf16.mxu0 %v799
          %831 = vmatpush1.bf16.msra.mxu0 %v798
          %832 = vmatprep.subr.bf16.mxu0 0
          %833 = vmatpush1.bf16.msra.mxu0 0
          %834 = vmatprep.subr.bf16.mxu0 0
          %835 = vmatpush1.bf16.msra.mxu0 0
          %836 = vmatprep.subr.bf16.mxu0 0
          %837 = vmatpush1.bf16.msra.mxu0 0
          %838 = vmatprep.subr.bf16.mxu0 0
          %839 = vmatpush1.bf16.msra.mxu0 0
          %840 = vmatprep.subr.bf16.mxu0 0
          %841 = vmatpush1.bf16.msra.mxu0 0
          %842 = vmatprep.subr.bf16.mxu0 0
          %843 = vmatpush1.bf16.msra.mxu0 0
          %844 = vmatprep.subr.bf16.mxu0 0
          %845 = vmatpush1.bf16.msra.mxu0 0
          %846 = vmatprep.subr.bf16.mxu0 0
          %847 = vmatpush1.bf16.msra.mxu0 0
          %848 = vmatprep.mubr.bf16.mxu0 0
          %849 = vmatmul.mubr.bf16.gmra.mrb[0].mxu0 %v707
          %v850 = vpop.f32.mrb[0].mxu0
          %v851 = vadd.f32 %v729, %v850
          %v852 = vpop.f32.mrb[0].mxu0
          %v853 = vadd.f32 %v733, %v852
          %v854 = vpop.f32.mrb[0].mxu0
          %v855 = vpop.f32.mrb[0].mxu0
          %856 = vdwg.mxu0
          %v857 = vld [vmem:[%s573] sm:$0xf]
          %v858 = vld [vmem:[%s600] sm:$0xff]
          %v859 = vld [vmem:[%s600 + $0x8] sm:$0xff]
          %v860 = vld [vmem:[%s600 + $0x10] sm:$0xff]
          %v861 = vld [vmem:[%s600 + $0x18] sm:$0xff]
          %v862 = vld [vmem:[%s600 + $0x20] sm:$0xff]
          %v863 = vld [vmem:[%s600 + $0x28] sm:$0xff]
          %v864 = vld [vmem:[%s600 + $0x30] sm:$0xff]
          %v865 = vld [vmem:[%s600 + $0x38] sm:$0xff]
          %v866 = vld [vmem:[%s600 + $0x40] sm:$0xff]
          %v867 = vld [vmem:[%s600 + $0x48] sm:$0xff]
          %v868 = vld [vmem:[%s600 + $0x50] sm:$0xff]
          %v869 = vld [vmem:[%s600 + $0x58] sm:$0xff]
          %v870 = vld [vmem:[%s600 + $0x60] sm:$0xff]
          %v871 = vld [vmem:[%s600 + $0x68] sm:$0xff]
          %v872 = vld [vmem:[%s600 + $0x70] sm:$0xff]
          %v873 = vld [vmem:[%s600 + $0x78] sm:$0xff]
          %v874 = vld [vmem:[%s701] sm:$0x3]
          %v876 = vlaneseq
          %v877 = vshrl.u32 %v876, 7
          %v878 = vsub.s32 0, %v877
          %v879 = vrot.slane %v874, %v878
          %v880 = vlaneseq
          %v881 = vshrl.u32 %v880, 7
          %v882 = vsub.s32 1, %v881
          %v883 = vrot.slane %v874, %v882
          %v902 = vunpack.c.l.b16 %v858
          %v903 = vunpack.c.h.b16 %v858
          %v904 = vunpack.c.l.b16 %v859
          %v905 = vunpack.c.h.b16 %v859
          %v906 = vunpack.c.l.b16 %v860
          %v907 = vunpack.c.h.b16 %v860
          %v908 = vunpack.c.l.b16 %v861
          %v909 = vunpack.c.h.b16 %v861
          %v910 = vunpack.c.l.b16 %v862
          %v911 = vunpack.c.h.b16 %v862
          %v912 = vunpack.c.l.b16 %v863
          %v913 = vunpack.c.h.b16 %v863
          %v914 = vunpack.c.l.b16 %v864
          %v915 = vunpack.c.h.b16 %v864
          %v916 = vunpack.c.l.b16 %v865
          %v917 = vunpack.c.h.b16 %v865
          %v918 = vunpack.c.l.b16 %v866
          %v919 = vunpack.c.h.b16 %v866
          %v920 = vunpack.c.l.b16 %v867
          %v921 = vunpack.c.h.b16 %v867
          %v922 = vunpack.c.l.b16 %v868
          %v923 = vunpack.c.h.b16 %v868
          %v924 = vunpack.c.l.b16 %v869
          %v925 = vunpack.c.h.b16 %v869
          %v926 = vunpack.c.l.b16 %v870
          %v927 = vunpack.c.h.b16 %v870
          %v928 = vunpack.c.l.b16 %v871
          %v929 = vunpack.c.h.b16 %v871
          %v930 = vunpack.c.l.b16 %v872
          %v931 = vunpack.c.h.b16 %v872
          %v932 = vunpack.c.l.b16 %v873
          %v933 = vunpack.c.h.b16 %v873
          %v934 = vpack.c.b16 %v904, %v902
          %v935 = vpack.c.b16 %v905, %v903
          %v936 = vpack.c.b16 %v908, %v906
          %v937 = vpack.c.b16 %v909, %v907
          %v938 = vpack.c.b16 %v912, %v910
          %v939 = vpack.c.b16 %v913, %v911
          %v940 = vpack.c.b16 %v916, %v914
          %v941 = vpack.c.b16 %v917, %v915
          %v942 = vpack.c.b16 %v920, %v918
          %v943 = vpack.c.b16 %v921, %v919
          %v944 = vpack.c.b16 %v924, %v922
          %v945 = vpack.c.b16 %v925, %v923
          %v946 = vpack.c.b16 %v928, %v926
          %v947 = vpack.c.b16 %v929, %v927
          %v948 = vpack.c.b16 %v932, %v930
          %v949 = vpack.c.b16 %v933, %v931
          %966 = vmatprep.subr.bf16.mxu0 %v935
          %967 = vmatpush1.bf16.msra.mxu0 %v934
          %968 = vmatprep.subr.bf16.mxu0 %v937
          %969 = vmatpush1.bf16.msra.mxu0 %v936
          %970 = vmatprep.subr.bf16.mxu0 %v939
          %971 = vmatpush1.bf16.msra.mxu0 %v938
          %972 = vmatprep.subr.bf16.mxu0 %v941
          %973 = vmatpush1.bf16.msra.mxu0 %v940
          %974 = vmatprep.subr.bf16.mxu0 %v943
          %975 = vmatpush1.bf16.msra.mxu0 %v942
          %976 = vmatprep.subr.bf16.mxu0 %v945
          %977 = vmatpush1.bf16.msra.mxu0 %v944
          %978 = vmatprep.subr.bf16.mxu0 %v947
          %979 = vmatpush1.bf16.msra.mxu0 %v946
          %980 = vmatprep.subr.bf16.mxu0 %v949
          %981 = vmatpush1.bf16.msra.mxu0 %v948
          %982 = vmatprep.subr.bf16.mxu0 0
          %983 = vmatpush1.bf16.msra.mxu0 0
          %984 = vmatprep.subr.bf16.mxu0 0
          %985 = vmatpush1.bf16.msra.mxu0 0
          %986 = vmatprep.subr.bf16.mxu0 0
          %987 = vmatpush1.bf16.msra.mxu0 0
          %988 = vmatprep.subr.bf16.mxu0 0
          %989 = vmatpush1.bf16.msra.mxu0 0
          %990 = vmatprep.subr.bf16.mxu0 0
          %991 = vmatpush1.bf16.msra.mxu0 0
          %992 = vmatprep.subr.bf16.mxu0 0
          %993 = vmatpush1.bf16.msra.mxu0 0
          %994 = vmatprep.subr.bf16.mxu0 0
          %995 = vmatpush1.bf16.msra.mxu0 0
          %996 = vmatprep.subr.bf16.mxu0 0
          %997 = vmatpush1.bf16.msra.mxu0 0
          %998 = vmatprep.mubr.bf16.mxu0 0
          %999 = vmatmul.mubr.bf16.gmra.mrb[0].mxu0 %v857
          %v1000 = vpop.f32.mrb[0].mxu0
          %v1001 = vadd.f32 %v879, %v1000
          %v1002 = vpop.f32.mrb[0].mxu0
          %v1003 = vadd.f32 %v883, %v1002
          %v1004 = vpop.f32.mrb[0].mxu0
          %v1005 = vpop.f32.mrb[0].mxu0
          %1006 = vdwg.mxu0
          %v1007 = vpack.c.bf16 %v851, %v851
          %v1008 = vpack.c.bf16 %v853, %v853
          %v1011 = vunpack.c.l.b16 %v1007
          %v1012 = vunpack.c.l.b16 %v1008
          %v1013 = vpack.c.b16 %v1012, %v1011
          %1015 = vst [vmem:[#allocation2] sm:$0xff] %v1013
          %v1016 = vpack.c.bf16 %v1001, %v1001
          %v1017 = vpack.c.bf16 %v1003, %v1003
          %v1020 = vunpack.c.l.b16 %v1016
          %v1021 = vunpack.c.l.b16 %v1017
          %v1022 = vpack.c.b16 %v1021, %v1020
          %1024 = vst [vmem:[#allocation3] sm:$0xff] %v1022
        $region96: #{tpu_custom_call.1} parent=63 // pred_fallthru
          _
        %v1025 = vld [vmem:[%s555] sm:$0xf]
        %v1026 = vld [vmem:[%s582] sm:$0xff]
        %v1027 = vld [vmem:[%s582 + $0x8] sm:$0xff]
        %v1028 = vld [vmem:[%s582 + $0x10] sm:$0xff]
        %v1029 = vld [vmem:[%s582 + $0x18] sm:$0xff]
        %v1030 = vld [vmem:[%s582 + $0x20] sm:$0xff]
        %v1031 = vld [vmem:[%s582 + $0x28] sm:$0xff]
        %v1032 = vld [vmem:[%s582 + $0x30] sm:$0xff]
        %v1033 = vld [vmem:[%s582 + $0x38] sm:$0xff]
        %v1034 = vld [vmem:[%s582 + $0x40] sm:$0xff]
        %v1035 = vld [vmem:[%s582 + $0x48] sm:$0xff]
        %v1036 = vld [vmem:[%s582 + $0x50] sm:$0xff]
        %v1037 = vld [vmem:[%s582 + $0x58] sm:$0xff]
        %v1038 = vld [vmem:[%s582 + $0x60] sm:$0xff]
        %v1039 = vld [vmem:[%s582 + $0x68] sm:$0xff]
        %v1040 = vld [vmem:[%s582 + $0x70] sm:$0xff]
        %v1041 = vld [vmem:[%s582 + $0x78] sm:$0xff]
        %v1042 = vld [vmem:[%s693] sm:$0x3]
        %v1044 = vlaneseq
        %v1045 = vshrl.u32 %v1044, 7
        %v1046 = vsub.s32 0, %v1045
        %v1047 = vrot.slane %v1042, %v1046
        %v1048 = vlaneseq
        %v1049 = vshrl.u32 %v1048, 7
        %v1050 = vsub.s32 1, %v1049
        %v1051 = vrot.slane %v1042, %v1050
        %v1070 = vunpack.c.l.b16 %v1026
        %v1071 = vunpack.c.h.b16 %v1026
        %v1072 = vunpack.c.l.b16 %v1027
        %v1073 = vunpack.c.h.b16 %v1027
        %v1074 = vunpack.c.l.b16 %v1028
        %v1075 = vunpack.c.h.b16 %v1028
        %v1076 = vunpack.c.l.b16 %v1029
        %v1077 = vunpack.c.h.b16 %v1029
        %v1078 = vunpack.c.l.b16 %v1030
        %v1079 = vunpack.c.h.b16 %v1030
        %v1080 = vunpack.c.l.b16 %v1031
        %v1081 = vunpack.c.h.b16 %v1031
        %v1082 = vunpack.c.l.b16 %v1032
        %v1083 = vunpack.c.h.b16 %v1032
        %v1084 = vunpack.c.l.b16 %v1033
        %v1085 = vunpack.c.h.b16 %v1033
        %v1086 = vunpack.c.l.b16 %v1034
        %v1087 = vunpack.c.h.b16 %v1034
        %v1088 = vunpack.c.l.b16 %v1035
        %v1089 = vunpack.c.h.b16 %v1035
        %v1090 = vunpack.c.l.b16 %v1036
        %v1091 = vunpack.c.h.b16 %v1036
        %v1092 = vunpack.c.l.b16 %v1037
        %v1093 = vunpack.c.h.b16 %v1037
        %v1094 = vunpack.c.l.b16 %v1038
        %v1095 = vunpack.c.h.b16 %v1038
        %v1096 = vunpack.c.l.b16 %v1039
        %v1097 = vunpack.c.h.b16 %v1039
        %v1098 = vunpack.c.l.b16 %v1040
        %v1099 = vunpack.c.h.b16 %v1040
        %v1100 = vunpack.c.l.b16 %v1041
        %v1101 = vunpack.c.h.b16 %v1041
        %v1102 = vpack.c.b16 %v1072, %v1070
        %v1103 = vpack.c.b16 %v1073, %v1071
        %v1104 = vpack.c.b16 %v1076, %v1074
        %v1105 = vpack.c.b16 %v1077, %v1075
        %v1106 = vpack.c.b16 %v1080, %v1078
        %v1107 = vpack.c.b16 %v1081, %v1079
        %v1108 = vpack.c.b16 %v1084, %v1082
        %v1109 = vpack.c.b16 %v1085, %v1083
        %v1110 = vpack.c.b16 %v1088, %v1086
        %v1111 = vpack.c.b16 %v1089, %v1087
        %v1112 = vpack.c.b16 %v1092, %v1090
        %v1113 = vpack.c.b16 %v1093, %v1091
        %v1114 = vpack.c.b16 %v1096, %v1094
        %v1115 = vpack.c.b16 %v1097, %v1095
        %v1116 = vpack.c.b16 %v1100, %v1098
        %v1117 = vpack.c.b16 %v1101, %v1099
        %1134 = vmatprep.subr.bf16.mxu0 %v1103
        %1135 = vmatpush1.bf16.msra.mxu0 %v1102
        %1136 = vmatprep.subr.bf16.mxu0 %v1105
        %1137 = vmatpush1.bf16.msra.mxu0 %v1104
        %1138 = vmatprep.subr.bf16.mxu0 %v1107
        %1139 = vmatpush1.bf16.msra.mxu0 %v1106
        %1140 = vmatprep.subr.bf16.mxu0 %v1109
        %1141 = vmatpush1.bf16.msra.mxu0 %v1108
        %1142 = vmatprep.subr.bf16.mxu0 %v1111
        %1143 = vmatpush1.bf16.msra.mxu0 %v1110
        %1144 = vmatprep.subr.bf16.mxu0 %v1113
        %1145 = vmatpush1.bf16.msra.mxu0 %v1112
        %1146 = vmatprep.subr.bf16.mxu0 %v1115
        %1147 = vmatpush1.bf16.msra.mxu0 %v1114
        %1148 = vmatprep.subr.bf16.mxu0 %v1117
        %1149 = vmatpush1.bf16.msra.mxu0 %v1116
        %1150 = vmatprep.subr.bf16.mxu0 0
        %1151 = vmatpush1.bf16.msra.mxu0 0
        %1152 = vmatprep.subr.bf16.mxu0 0
        %1153 = vmatpush1.bf16.msra.mxu0 0
        %1154 = vmatprep.subr.bf16.mxu0 0
        %1155 = vmatpush1.bf16.msra.mxu0 0
        %1156 = vmatprep.subr.bf16.mxu0 0
        %1157 = vmatpush1.bf16.msra.mxu0 0
        %1158 = vmatprep.subr.bf16.mxu0 0
        %1159 = vmatpush1.bf16.msra.mxu0 0
        %1160 = vmatprep.subr.bf16.mxu0 0
        %1161 = vmatpush1.bf16.msra.mxu0 0
        %1162 = vmatprep.subr.bf16.mxu0 0
        %1163 = vmatpush1.bf16.msra.mxu0 0
        %1164 = vmatprep.subr.bf16.mxu0 0
        %1165 = vmatpush1.bf16.msra.mxu0 0
        %1166 = vmatprep.mubr.bf16.mxu0 0
        %1167 = vmatmul.mubr.bf16.gmra.mrb[0].mxu0 %v1025
        %v1168 = vpop.f32.mrb[0].mxu0
        %v1169 = vadd.f32 %v1047, %v1168
        %v1170 = vpop.f32.mrb[0].mxu0
        %v1171 = vadd.f32 %v1051, %v1170
        %v1172 = vpop.f32.mrb[0].mxu0
        %v1173 = vpop.f32.mrb[0].mxu0
        %1174 = vdwg.mxu0
        %v1175 = vmul.f32 %v1169, 0.088388346
        %v1176 = vmul.f32 %v1171, 0.088388346
        %v1177 = vpack.c.bf16 %v1175, %v1175
        %v1178 = vpack.c.bf16 %v1176, %v1176
        %s1179 = smul.u32 0, 2
        %s1180 = smul.addr %s1179, 4
        %s1181 = scalar_lea.vmem [#allocation2], %s1180
        %v1182 = vld [vmem:[%s1181] sm:$0xf]
        %s1183 = smul.addr %s1179, 4
        %s1184 = scalar_lea.vmem [#allocation3], %s1183
        %v1185 = vld [vmem:[%s1184] sm:$0xf]
        %1186 = vmatprep.subr.bf16.mxu0 0
        %1187 = vmatpush1.bf16.xpose.msra.mxu0 %v1182
        %1188 = vmatprep.subr.bf16.mxu0 0
        %1189 = vmatpush1.bf16.xpose.msra.mxu0 0
        %1190 = vmatprep.subr.bf16.mxu0 0
        %1191 = vmatpush1.bf16.xpose.msra.mxu0 0
        %1192 = vmatprep.subr.bf16.mxu0 0
        %1193 = vmatpush1.bf16.xpose.msra.mxu0 0
        %1194 = vmatprep.subr.bf16.mxu0 0
        %1195 = vmatpush1.bf16.xpose.msra.mxu0 0
        %1196 = vmatprep.subr.bf16.mxu0 0
        %1197 = vmatpush1.bf16.xpose.msra.mxu0 0
        %1198 = vmatprep.subr.bf16.mxu0 0
        %1199 = vmatpush1.bf16.xpose.msra.mxu0 0
        %1200 = vmatprep.subr.bf16.mxu0 0
        %1201 = vmatpush1.bf16.xpose.msra.mxu0 0
        %1202 = vmatprep.subr.bf16.mxu0 0
        %1203 = vmatpush1.bf16.xpose.msra.mxu0 0
        %1204 = vmatprep.subr.bf16.mxu0 0
        %1205 = vmatpush1.bf16.xpose.msra.mxu0 0
        %1206 = vmatprep.subr.bf16.mxu0 0
        %1207 = vmatpush1.bf16.xpose.msra.mxu0 0
        %1208 = vmatprep.subr.bf16.mxu0 0
        %1209 = vmatpush1.bf16.xpose.msra.mxu0 0
        %1210 = vmatprep.subr.bf16.mxu0 0
        %1211 = vmatpush1.bf16.xpose.msra.mxu0 0
        %1212 = vmatprep.subr.bf16.mxu0 0
        %1213 = vmatpush1.bf16.xpose.msra.mxu0 0
        %1214 = vmatprep.subr.bf16.mxu0 0
        %1215 = vmatpush1.bf16.xpose.msra.mxu0 0
        %1216 = vmatprep.subr.bf16.mxu0 0
        %1217 = vmatpush1.bf16.xpose.msra.mxu0 0
        %1218 = vmatprep.mubr.bf16.mxu0 0
        %1219 = vmatmul.mubr.bf16.gmra.mrb[0].mxu0 %v1177
        %v1220 = vpop.f32.mrb[0].mxu0
        %v1221 = vadd.f32 0.0, %v1220
        %v1222 = vpop.f32.mrb[0].mxu0
        %v1223 = vpop.f32.mrb[0].mxu0
        %v1224 = vpop.f32.mrb[0].mxu0
        %1225 = vdwg.mxu0
        %vm1226 = vcmask 64512
        %v1227 = vsel %vm1226, %v1221, -inf
        %1228 = vmax.xlane.f32.xlu0 %v1227
        %v1229 = vpop.xlane.xlu0 %1228
        %v1230 = vsub.f32 -inf, %v1229
        %v1231 = vmul.f32 %v1230, 1.442695
        %v1232 = vpow.pop %v1231
        %v1233 = vsub.f32 %v1221, %v1229
        %v1234 = vmul.f32 %v1233, 1.442695
        %v1235 = vpow.pop %v1234
        %v1236 = vmul.f32 %v1232, 0.0
        %v1237 = vsel %vm1226, %v1235, 0.0
        %1238 = vadd.xlane.f32.xlu0 %v1237
        %v1239 = vpop.xlane.xlu0 %1238
        %v1240 = vadd.f32 %v1236, %v1239
        %v1241 = vpack.c.bf16 %v1235, %v1235
        %v1243 = vsel %vm1226, %v1241, 0
        %vm1245 = vcmask 1043456
        %v1247 = vsel %vm1245, %v1185, 0
        %1249 = vmatprep.subr.bf16.mxu0 0
        %1250 = vmatpush1.bf16.msra.mxu0 %v1247
        %1251 = vmatprep.subr.bf16.mxu0 0
        %1252 = vmatpush1.bf16.msra.mxu0 0
        %1253 = vmatprep.subr.bf16.mxu0 0
        %1254 = vmatpush1.bf16.msra.mxu0 0
        %1255 = vmatprep.subr.bf16.mxu0 0
        %1256 = vmatpush1.bf16.msra.mxu0 0
        %1257 = vmatprep.subr.bf16.mxu0 0
        %1258 = vmatpush1.bf16.msra.mxu0 0
        %1259 = vmatprep.subr.bf16.mxu0 0
        %1260 = vmatpush1.bf16.msra.mxu0 0
        %1261 = vmatprep.subr.bf16.mxu0 0
        %1262 = vmatpush1.bf16.msra.mxu0 0
        %1263 = vmatprep.subr.bf16.mxu0 0
        %1264 = vmatpush1.bf16.msra.mxu0 0
        %1265 = vmatprep.subr.bf16.mxu0 0
        %1266 = vmatpush1.bf16.msra.mxu0 0
        %1267 = vmatprep.subr.bf16.mxu0 0
        %1268 = vmatpush1.bf16.msra.mxu0 0
        %1269 = vmatprep.subr.bf16.mxu0 0
        %1270 = vmatpush1.bf16.msra.mxu0 0
        %1271 = vmatprep.subr.bf16.mxu0 0
        %1272 = vmatpush1.bf16.msra.mxu0 0
        %1273 = vmatprep.subr.bf16.mxu0 0
        %1274 = vmatpush1.bf16.msra.mxu0 0
        %1275 = vmatprep.subr.bf16.mxu0 0
        %1276 = vmatpush1.bf16.msra.mxu0 0
        %1277 = vmatprep.subr.bf16.mxu0 0
        %1278 = vmatpush1.bf16.msra.mxu0 0
        %1279 = vmatprep.subr.bf16.mxu0 0
        %1280 = vmatpush1.bf16.msra.mxu0 0
        %1281 = vmatprep.mubr.bf16.mxu0 0
        %1282 = vmatmul.mubr.bf16.gmra.mrb[0].mxu0 %v1243
        %v1283 = vpop.f32.mrb[0].mxu0
        %v1284 = vadd.f32 0.0, %v1283
        %v1285 = vpop.f32.mrb[0].mxu0
        %v1286 = vpop.f32.mrb[0].mxu0
        %v1287 = vpop.f32.mrb[0].mxu0
        %1288 = vdwg.mxu0
        %v1289 = vadd.f32 %v1236, %v1284
        %v1290 = vrcp.pop %v1240
        %v1291 = vmul.f32 %v1289, %v1290
        %v1292 = vld [vmem:[%s1181 + $0x4] sm:$0xf]
        %v1293 = vld [vmem:[%s1184 + $0x4] sm:$0xf]
        %1294 = vmatprep.subr.bf16.mxu0 0
        %1295 = vmatpush1.bf16.xpose.msra.mxu0 %v1292
        %1296 = vmatprep.subr.bf16.mxu0 0
        %1297 = vmatpush1.bf16.xpose.msra.mxu0 0
        %1298 = vmatprep.subr.bf16.mxu0 0
        %1299 = vmatpush1.bf16.xpose.msra.mxu0 0
        %1300 = vmatprep.subr.bf16.mxu0 0
        %1301 = vmatpush1.bf16.xpose.msra.mxu0 0
        %1302 = vmatprep.subr.bf16.mxu0 0
        %1303 = vmatpush1.bf16.xpose.msra.mxu0 0
        %1304 = vmatprep.subr.bf16.mxu0 0
        %1305 = vmatpush1.bf16.xpose.msra.mxu0 0
        %1306 = vmatprep.subr.bf16.mxu0 0
        %1307 = vmatpush1.bf16.xpose.msra.mxu0 0
        %1308 = vmatprep.subr.bf16.mxu0 0
        %1309 = vmatpush1.bf16.xpose.msra.mxu0 0
        %1310 = vmatprep.subr.bf16.mxu0 0
        %1311 = vmatpush1.bf16.xpose.msra.mxu0 0
        %1312 = vmatprep.subr.bf16.mxu0 0
        %1313 = vmatpush1.bf16.xpose.msra.mxu0 0
        %1314 = vmatprep.subr.bf16.mxu0 0
        %1315 = vmatpush1.bf16.xpose.msra.mxu0 0
        %1316 = vmatprep.subr.bf16.mxu0 0
        %1317 = vmatpush1.bf16.xpose.msra.mxu0 0
        %1318 = vmatprep.subr.bf16.mxu0 0
        %1319 = vmatpush1.bf16.xpose.msra.mxu0 0
        %1320 = vmatprep.subr.bf16.mxu0 0
        %1321 = vmatpush1.bf16.xpose.msra.mxu0 0
        %1322 = vmatprep.subr.bf16.mxu0 0
        %1323 = vmatpush1.bf16.xpose.msra.mxu0 0
        %1324 = vmatprep.subr.bf16.mxu0 0
        %1325 = vmatpush1.bf16.xpose.msra.mxu0 0
        %1326 = vmatprep.mubr.bf16.mxu0 0
        %1327 = vmatmul.mubr.bf16.gmra.mrb[0].mxu0 %v1178
        %v1328 = vpop.f32.mrb[0].mxu0
        %v1329 = vadd.f32 0.0, %v1328
        %v1330 = vpop.f32.mrb[0].mxu0
        %v1331 = vpop.f32.mrb[0].mxu0
        %v1332 = vpop.f32.mrb[0].mxu0
        %1333 = vdwg.mxu0
        %v1334 = vsel %vm1226, %v1329, -inf
        %1335 = vmax.xlane.f32.xlu0 %v1334
        %v1336 = vpop.xlane.xlu0 %1335
        %v1337 = vsub.f32 -inf, %v1336
        %v1338 = vmul.f32 %v1337, 1.442695
        %v1339 = vpow.pop %v1338
        %v1340 = vsub.f32 %v1329, %v1336
        %v1341 = vmul.f32 %v1340, 1.442695
        %v1342 = vpow.pop %v1341
        %v1343 = vmul.f32 %v1339, 0.0
        %v1344 = vsel %vm1226, %v1342, 0.0
        %1345 = vadd.xlane.f32.xlu0 %v1344
        %v1346 = vpop.xlane.xlu0 %1345
        %v1347 = vadd.f32 %v1343, %v1346
        %v1348 = vpack.c.bf16 %v1342, %v1342
        %v1350 = vsel %vm1226, %v1348, 0
        %v1353 = vsel %vm1245, %v1293, 0
        %1355 = vmatprep.subr.bf16.mxu0 0
        %1356 = vmatpush1.bf16.msra.mxu0 %v1353
        %1357 = vmatprep.subr.bf16.mxu0 0
        %1358 = vmatpush1.bf16.msra.mxu0 0
        %1359 = vmatprep.subr.bf16.mxu0 0
        %1360 = vmatpush1.bf16.msra.mxu0 0
        %1361 = vmatprep.subr.bf16.mxu0 0
        %1362 = vmatpush1.bf16.msra.mxu0 0
        %1363 = vmatprep.subr.bf16.mxu0 0
        %1364 = vmatpush1.bf16.msra.mxu0 0
        %1365 = vmatprep.subr.bf16.mxu0 0
        %1366 = vmatpush1.bf16.msra.mxu0 0
        %1367 = vmatprep.subr.bf16.mxu0 0
        %1368 = vmatpush1.bf16.msra.mxu0 0
        %1369 = vmatprep.subr.bf16.mxu0 0
        %1370 = vmatpush1.bf16.msra.mxu0 0
        %1371 = vmatprep.subr.bf16.mxu0 0
        %1372 = vmatpush1.bf16.msra.mxu0 0
        %1373 = vmatprep.subr.bf16.mxu0 0
        %1374 = vmatpush1.bf16.msra.mxu0 0
        %1375 = vmatprep.subr.bf16.mxu0 0
        %1376 = vmatpush1.bf16.msra.mxu0 0
        %1377 = vmatprep.subr.bf16.mxu0 0
        %1378 = vmatpush1.bf16.msra.mxu0 0
        %1379 = vmatprep.subr.bf16.mxu0 0
        %1380 = vmatpush1.bf16.msra.mxu0 0
        %1381 = vmatprep.subr.bf16.mxu0 0
        %1382 = vmatpush1.bf16.msra.mxu0 0
        %1383 = vmatprep.subr.bf16.mxu0 0
        %1384 = vmatpush1.bf16.msra.mxu0 0
        %1385 = vmatprep.subr.bf16.mxu0 0
        %1386 = vmatpush1.bf16.msra.mxu0 0
        %1387 = vmatprep.mubr.bf16.mxu0 0
        %1388 = vmatmul.mubr.bf16.gmra.mrb[0].mxu0 %v1350
        %v1389 = vpop.f32.mrb[0].mxu0
        %v1390 = vadd.f32 0.0, %v1389
        %v1391 = vpop.f32.mrb[0].mxu0
        %v1392 = vpop.f32.mrb[0].mxu0
        %v1393 = vpop.f32.mrb[0].mxu0
        %1394 = vdwg.mxu0
        %v1395 = vadd.f32 %v1343, %v1390
        %v1396 = vrcp.pop %v1347
        %v1397 = vmul.f32 %v1395, %v1396
        %v1398 = vpack.c.bf16 %v1291, %v1291
        %v1399 = vpack.c.bf16 %v1397, %v1397
        %v1400 = vld [vmem:[%s609] sm:$0xf]
        %v1401 = vld [vmem:[%s609 + $0x4] sm:$0xf]
        %v1402 = vld [vmem:[%s609 + $0x8] sm:$0xf]
        %v1403 = vld [vmem:[%s609 + $0xc] sm:$0xf]
        %v1404 = vld [vmem:[%s609 + $0x10] sm:$0xf]
        %v1405 = vld [vmem:[%s609 + $0x14] sm:$0xf]
        %v1406 = vld [vmem:[%s609 + $0x18] sm:$0xf]
        %v1407 = vld [vmem:[%s609 + $0x1c] sm:$0xf]
        %v1408 = vld [vmem:[%s609 + $0x20] sm:$0xf]
        %v1409 = vld [vmem:[%s609 + $0x24] sm:$0xf]
        %v1410 = vld [vmem:[%s609 + $0x28] sm:$0xf]
        %v1411 = vld [vmem:[%s609 + $0x2c] sm:$0xf]
        %v1412 = vld [vmem:[%s609 + $0x30] sm:$0xf]
        %v1413 = vld [vmem:[%s609 + $0x34] sm:$0xf]
        %v1414 = vld [vmem:[%s609 + $0x38] sm:$0xf]
        %v1415 = vld [vmem:[%s609 + $0x3c] sm:$0xf]
        %v1416 = vld [vmem:[%s609 + $0x40] sm:$0xf]
        %v1417 = vld [vmem:[%s609 + $0x44] sm:$0xf]
        %v1418 = vld [vmem:[%s609 + $0x48] sm:$0xf]
        %v1419 = vld [vmem:[%s609 + $0x4c] sm:$0xf]
        %v1420 = vld [vmem:[%s609 + $0x50] sm:$0xf]
        %v1421 = vld [vmem:[%s609 + $0x54] sm:$0xf]
        %v1422 = vld [vmem:[%s609 + $0x58] sm:$0xf]
        %v1423 = vld [vmem:[%s609 + $0x5c] sm:$0xf]
        %v1424 = vld [vmem:[%s609 + $0x60] sm:$0xf]
        %v1425 = vld [vmem:[%s609 + $0x64] sm:$0xf]
        %v1426 = vld [vmem:[%s609 + $0x68] sm:$0xf]
        %v1427 = vld [vmem:[%s609 + $0x6c] sm:$0xf]
        %v1428 = vld [vmem:[%s609 + $0x70] sm:$0xf]
        %v1429 = vld [vmem:[%s609 + $0x74] sm:$0xf]
        %v1430 = vld [vmem:[%s609 + $0x78] sm:$0xf]
        %v1431 = vld [vmem:[%s609 + $0x7c] sm:$0xf]
        %v1464 = vunpack.c.l.b16 %v1400
        %v1465 = vunpack.c.l.b16 %v1401
        %v1466 = vunpack.c.l.b16 %v1402
        %v1467 = vunpack.c.l.b16 %v1403
        %v1468 = vunpack.c.l.b16 %v1404
        %v1469 = vunpack.c.l.b16 %v1405
        %v1470 = vunpack.c.l.b16 %v1406
        %v1471 = vunpack.c.l.b16 %v1407
        %v1472 = vunpack.c.l.b16 %v1408
        %v1473 = vunpack.c.l.b16 %v1409
        %v1474 = vunpack.c.l.b16 %v1410
        %v1475 = vunpack.c.l.b16 %v1411
        %v1476 = vunpack.c.l.b16 %v1412
        %v1477 = vunpack.c.l.b16 %v1413
        %v1478 = vunpack.c.l.b16 %v1414
        %v1479 = vunpack.c.l.b16 %v1415
        %v1480 = vunpack.c.l.b16 %v1416
        %v1481 = vunpack.c.l.b16 %v1417
        %v1482 = vunpack.c.l.b16 %v1418
        %v1483 = vunpack.c.l.b16 %v1419
        %v1484 = vunpack.c.l.b16 %v1420
        %v1485 = vunpack.c.l.b16 %v1421
        %v1486 = vunpack.c.l.b16 %v1422
        %v1487 = vunpack.c.l.b16 %v1423
        %v1488 = vunpack.c.l.b16 %v1424
        %v1489 = vunpack.c.l.b16 %v1425
        %v1490 = vunpack.c.l.b16 %v1426
        %v1491 = vunpack.c.l.b16 %v1427
        %v1492 = vunpack.c.l.b16 %v1428
        %v1493 = vunpack.c.l.b16 %v1429
        %v1494 = vunpack.c.l.b16 %v1430
        %v1495 = vunpack.c.l.b16 %v1431
        %v1496 = vpack.c.b16 %v1465, %v1464
        %v1497 = vpack.c.b16 %v1467, %v1466
        %v1498 = vpack.c.b16 %v1469, %v1468
        %v1499 = vpack.c.b16 %v1471, %v1470
        %v1500 = vpack.c.b16 %v1473, %v1472
        %v1501 = vpack.c.b16 %v1475, %v1474
        %v1502 = vpack.c.b16 %v1477, %v1476
        %v1503 = vpack.c.b16 %v1479, %v1478
        %v1504 = vpack.c.b16 %v1481, %v1480
        %v1505 = vpack.c.b16 %v1483, %v1482
        %v1506 = vpack.c.b16 %v1485, %v1484
        %v1507 = vpack.c.b16 %v1487, %v1486
        %v1508 = vpack.c.b16 %v1489, %v1488
        %v1509 = vpack.c.b16 %v1491, %v1490
        %v1510 = vpack.c.b16 %v1493, %v1492
        %v1511 = vpack.c.b16 %v1495, %v1494
        %1528 = vmatprep.subr.bf16.mxu0 0
        %1529 = vmatpush1.bf16.msra.mxu0 %v1496
        %1530 = vmatprep.subr.bf16.mxu0 0
        %1531 = vmatpush1.bf16.msra.mxu0 %v1497
        %1532 = vmatprep.subr.bf16.mxu0 0
        %1533 = vmatpush1.bf16.msra.mxu0 %v1498
        %1534 = vmatprep.subr.bf16.mxu0 0
        %1535 = vmatpush1.bf16.msra.mxu0 %v1499
        %1536 = vmatprep.subr.bf16.mxu0 0
        %1537 = vmatpush1.bf16.msra.mxu0 %v1500
        %1538 = vmatprep.subr.bf16.mxu0 0
        %1539 = vmatpush1.bf16.msra.mxu0 %v1501
        %1540 = vmatprep.subr.bf16.mxu0 0
        %1541 = vmatpush1.bf16.msra.mxu0 %v1502
        %1542 = vmatprep.subr.bf16.mxu0 0
        %1543 = vmatpush1.bf16.msra.mxu0 %v1503
        %1544 = vmatprep.subr.bf16.mxu0 0
        %1545 = vmatpush1.bf16.msra.mxu0 %v1504
        %1546 = vmatprep.subr.bf16.mxu0 0
        %1547 = vmatpush1.bf16.msra.mxu0 %v1505
        %1548 = vmatprep.subr.bf16.mxu0 0
        %1549 = vmatpush1.bf16.msra.mxu0 %v1506
        %1550 = vmatprep.subr.bf16.mxu0 0
        %1551 = vmatpush1.bf16.msra.mxu0 %v1507
        %1552 = vmatprep.subr.bf16.mxu0 0
        %1553 = vmatpush1.bf16.msra.mxu0 %v1508
        %1554 = vmatprep.subr.bf16.mxu0 0
        %1555 = vmatpush1.bf16.msra.mxu0 %v1509
        %1556 = vmatprep.subr.bf16.mxu0 0
        %1557 = vmatpush1.bf16.msra.mxu0 %v1510
        %1558 = vmatprep.subr.bf16.mxu0 0
        %1559 = vmatpush1.bf16.msra.mxu0 %v1511
        %1560 = vmatprep.mubr.bf16.mxu0 %v1399
        %1561 = vmatmul.mubr.bf16.gmra.mrb[0].mxu0 %v1398
        %v1562 = vpop.f32.mrb[0].mxu0
        %v1563 = vadd.f32 0.0, %v1562
        %v1564 = vpop.f32.mrb[0].mxu0
        %v1565 = vpop.f32.mrb[0].mxu0
        %v1566 = vpop.f32.mrb[0].mxu0
        %1567 = vdwg.mxu0
        %s1568 = smul.u32 %s44, 8
        %p1569 = scmp.eq.s32.totalorder %s43, 0
        // Predicated region
        $region97: #{tpu_custom_call.1} parent=63 // pred_check
          %p1570 = pneg %p1569
        $region98: #{tpu_custom_call.1} parent=63 // pred_check_branch
          %1572 = sbr.rel (%p1570) target = $region100
        $region99: #{tpu_custom_call.1} parent=63 // pred_region
          %s1573 = scalar_lea.vmem [#allocation4], %s1568
          %1574 = vst [vmem:[%s1573] sm:$0xff] %v1563
        $region100: #{tpu_custom_call.1} parent=63 // pred_fallthru
          _
        %p1575 = scmp.ne.s32.totalorder %s43, 0
        // Predicated region
        $region101: #{tpu_custom_call.1} parent=63 // pred_check
          %p1576 = pneg %p1575
        $region102: #{tpu_custom_call.1} parent=63 // pred_check_branch
          %1578 = sbr.rel (%p1576) target = $region104
        $region103: #{tpu_custom_call.1} parent=63 // pred_region
          %s1579 = scalar_lea.vmem [#allocation4], %s1568
          %v1580 = vld [vmem:[%s1579] sm:$0xff]
          %v1581 = vadd.f32 %v1580, %v1563
          %1582 = vst [vmem:[%s1579] sm:$0xff] %v1581
        $region104: #{tpu_custom_call.1} parent=63 // pred_fallthru
          _
        %p1583 = scmp.eq.s32.totalorder %s43, 1
        // Predicated region
        $region105: #{tpu_custom_call.1} parent=63 // pred_check
          %p1584 = pneg %p1583
        $region106: #{tpu_custom_call.1} parent=63 // pred_check_branch
          %1586 = sbr.rel (%p1584) target = $region108
        $region107: #{tpu_custom_call.1} parent=63 // pred_region
          %s1587 = scalar_lea.vmem [#allocation4], %s1568
          %v1588 = vld [vmem:[%s1587] sm:$0xff]
          %v1589 = vld [vmem:[%s10] sm:$0x1]
          %v1591 = vlaneseq
          %v1592 = vshrl.u32 %v1591, 7
          %v1593 = vsub.s32 0, %v1592
          %v1594 = vrot.slane %v1589, %v1593
          %v1596 = vadd.f32 %v1588, %v1594
          %1597 = vst [vmem:[%s689] sm:$0xff] %v1596
        $region108: #{tpu_custom_call.1} parent=63 // pred_fallthru
          _
        %s1598 = sand.u32 %s349, 1
        %s1599 = scalar_lea.sflag [#allocation7], %s1598
        %s1600 = sand.u32 %s349, 1
        %s1601 = smul.addr %s1600, 8
        %s1602 = scalar_lea.vmem [#allocation17], %s1601
        // Predicated region
        $region109: #{tpu_custom_call.1} parent=63 // pred_check
          %p1603 = pneg %p359
        $region110: #{tpu_custom_call.1} parent=63 // pred_check_branch
          %1605 = sbr.rel (%p1603) target = $region112
        $region111: #{tpu_custom_call.1} parent=63 // pred_region
          %s1607 = ssub.s32 128, 128
          %1608 = vsyncadd %s1599, %s1607
          %s1609 = sadd.s32 %s44, %s42
          %s1610 = smul.addr %s1609, 128
          %s1611 = scalar_lea.hbm %s11, %s1610
          %s1613 = sshll.u32 %s1602, 4
          %s1614 = int_to_ptr.vmem [resolvable:$true] %s1613
          %1616 = dma.vmem_to_hbm [thread:$0]  %s1614, 128, %s1611, %s1599
        $region112: #{tpu_custom_call.1} parent=63 // pred_fallthru
          _
      $region64: #{tpu_custom_call.1} parent=5 // pred_fallthru
        _
      %p1617 = scmp.le.s32.totalorder 2, %s32
      // Predicated region
      $region113: #{tpu_custom_call.1} parent=5 // pred_check
        %p1618 = pneg %p1617
      $region114: #{tpu_custom_call.1} parent=5 // pred_check_branch
        %1620 = sbr.rel (%p1618) target = $region116
      $region115: #{tpu_custom_call.1} parent=5 // pred_region
        %s1621 = ssub.s32 %s32, 2
        // Predicated region
        $region117: #{tpu_custom_call.1} parent=115 // pred_check
          %p1622 = pneg %p365
        $region118: #{tpu_custom_call.1} parent=115 // pred_check_branch
          %1624 = sbr.rel (%p1622) target = $region120
        $region119: #{tpu_custom_call.1} parent=115 // pred_region
          %s1625 = sand.u32 %s350, 1
          %s1626 = scalar_lea.sflag [#allocation7], %s1625
          %s1627 = sand.u32 %s350, 1
          %s1628 = smul.addr %s1627, 8
          %s1629 = scalar_lea.vmem [#allocation17], %s1628
          %1630 = dma.done %s1626, 128
        $region120: #{tpu_custom_call.1} parent=115 // pred_fallthru
          _
      $region116: #{tpu_custom_call.1} parent=5 // pred_fallthru
        _
    $region6: #{tpu_custom_call.1} parent=1 // loop_footer
      %s36 = sadd.s32 1, %s32
    $region7: #{tpu_custom_call.1} parent=1 // loop_footer_branch
      %31 = sbr.rel target = $region3
    $region8: #{tpu_custom_call.1} parent=1 // loop_exit
      _
    %1631 = vsyncpa [#allocation6], 1
    %s1632 = scalar_lea.sflag [#allocation6], 1
    %1633 = vsyncpa %s1632, 1
    %1634 = vsyncpa [#allocation9], 1
    %s1635 = scalar_lea.sflag [#allocation9], 1
    %1636 = vsyncpa %s1635, 1
    %1637 = vsyncpa [#allocation12], 1
    %s1638 = scalar_lea.sflag [#allocation12], 1
    %1639 = vsyncpa %s1638, 1
    %1640 = vsyncpa [#allocation15], 1
    %s1641 = scalar_lea.sflag [#allocation15], 1
    %1642 = vsyncpa %s1641, 1
    %1643 = vsyncpa [#allocation7], 1
    %s1644 = scalar_lea.sflag [#allocation7], 1
    %1645 = vsyncpa %s1644, 1

</llo_original>
